<compile_context>
chip_gen: v6e
topology: v6e:2x2x1
jax: 0.10.0
libtpu: 0.0.40
codegen_flags: <defaults>
</compile_context>

<pallas_src>
import functools

import jax
import jax.numpy as jnp
from jax.experimental import pallas as pl
from jax.experimental.pallas import tpu as pltpu


def _round_up(n, m):
    return ((n + m - 1) // m) * m


def _mlp_ae_kernel(
    x_ref,
    w1_ref, b1_ref, w2_ref, b2_ref, w3_ref, b3_ref,   # encoder
    w4_ref, b4_ref, w5_ref, b5_ref, w6_ref, b6_ref,   # decoder
    rec_ref, emb_ref,
):
    """Fused 6-layer MLP autoencoder for one batch tile.

    MXU matmuls consume operands in the compute dtype (f32 or bf16) and
    accumulate in f32; bias add / ReLU run on the VPU in f32.
    """
    cdt = w1_ref.dtype  # compute dtype of the MXU operands (pre-cast in wrapper)

    def linear(h, w_ref, b_ref):
        # w_ref already in compute dtype, b_ref already f32 -> no per-step casts.
        acc = jnp.dot(h, w_ref[...], preferred_element_type=jnp.float32)
        return acc + b_ref[...]                     # (1, out) broadcasts over rows

    x = x_ref[...]

    # ---- encoder ----
    h = jnp.maximum(linear(x, w1_ref, b1_ref), 0.0).astype(cdt)
    h = jnp.maximum(linear(h, w2_ref, b2_ref), 0.0).astype(cdt)
    emb = linear(h, w3_ref, b3_ref)                 # latent (lane-padded), no activation
    emb_ref[...] = emb.astype(emb_ref.dtype)        # lane-dense store (padded width)

    # ---- decoder ---- (padded emb lanes hit zero rows of w4 -> exact result)
    h = jnp.maximum(linear(emb.astype(cdt), w4_ref, b4_ref), 0.0).astype(cdt)
    h = jnp.maximum(linear(h, w5_ref, b5_ref), 0.0).astype(cdt)
    rec = linear(h, w6_ref, b6_ref)                 # reconstruction, no activation
    rec_ref[...] = rec.astype(rec_ref.dtype)


@functools.partial(jax.jit, static_argnames=("batch_tile",))
def mlp_autoencoder(x, params, *, batch_tile=256):
    """params: dict with w1..w6 ([in, out] layout) and b1..b6 ([1, out])."""
    B, inp_size = x.shape
    latent_size = params["w3"].shape[1]
    cdt = x.dtype

    # Sublane granularity: 8 rows for 32-bit dtypes, 16 for 16-bit (bf16 packing).
    sub = 16 if jnp.dtype(cdt).itemsize < 4 else 8

    # MXU-friendly batch tile: as large as requested, aligned to sublanes, and
    # the batch is zero-padded up to a multiple of the tile.
    tile = min(batch_tile, _round_up(B, sub))
    tile = _round_up(tile, sub)
    b_pad = _round_up(B, tile)
    if b_pad != B:
        x = jnp.pad(x, ((0, b_pad - B), (0, 0)))

    # Lane-pad the latent dim so the emb store is unmasked / lane-dense.
    latent_pad = _round_up(latent_size, 128)

    # Pre-cast once in the wrapper (not per grid step inside the kernel):
    # weights -> compute dtype (MXU operand), biases -> f32 (accumulator dtype).
    w = {f"w{i}": params[f"w{i}"].astype(cdt) for i in range(1, 7)}
    b = {f"b{i}": params[f"b{i}"].astype(jnp.float32) for i in range(1, 7)}
    if latent_pad != latent_size:
        pad = latent_pad - latent_size
        w["w3"] = jnp.pad(w["w3"], ((0, 0), (0, pad)))   # extra output lanes -> 0
        b["b3"] = jnp.pad(b["b3"], ((0, 0), (0, pad)))
        w["w4"] = jnp.pad(w["w4"], ((0, pad), (0, 0)))   # zero rows eat the padding

    param_args = []
    param_specs = []
    for i in range(1, 7):
        for arr in (w[f"w{i}"], b[f"b{i}"]):
            param_args.append(arr)
            # Full-block, grid-invariant spec (DMA'd once; index never changes).
            # NOTE: could be single-buffered (pl.Buffered(1)); negligible at this size.
            param_specs.append(pl.BlockSpec(arr.shape, lambda i_: (0, 0)))

    grid = (b_pad // tile,)

    # Advisory cost estimate for XLA scheduling.
    flops = 2 * b_pad * sum(wi.shape[0] * wi.shape[1] for wi in w.values())
    param_bytes = sum(a.size * a.dtype.itemsize for a in param_args)
    io_bytes = (x.size + b_pad * inp_size + b_pad * latent_pad) * jnp.dtype(cdt).itemsize
    cost = pl.CostEstimate(flops=flops, transcendentals=0,
                           bytes_accessed=io_bytes + param_bytes)

    rec, emb = pl.pallas_call(
        _mlp_ae_kernel,
        out_shape=(
            jax.ShapeDtypeStruct((b_pad, inp_size), cdt),
            jax.ShapeDtypeStruct((b_pad, latent_pad), cdt),
        ),
        grid_spec=pltpu.PrefetchScalarGridSpec(
            num_scalar_prefetch=0,
            grid=grid,
            in_specs=[pl.BlockSpec((tile, inp_size), lambda i: (i, 0))]
                     + param_specs,
            out_specs=[
                pl.BlockSpec((tile, inp_size), lambda i: (i, 0)),
                pl.BlockSpec((tile, latent_pad), lambda i: (i, 0)),
            ],
        ),
        compiler_params=pltpu.CompilerParams(
            dimension_semantics=("parallel",),
        ),
        cost_estimate=cost,
    )(x, *param_args)

    return rec[:B], emb[:B, :latent_size]


def init_params(key, inp_size, latent_size, dtype=jnp.float32):
    """Deterministic PyTorch-Linear-style init: U(-1/sqrt(fan_in), 1/sqrt(fan_in)).

    Weights are stored transposed relative to PyTorch, i.e. [in, out].
    """
    dims = [
        (inp_size, latent_size * 10),       # encoder L1
        (latent_size * 10, latent_size * 5),
        (latent_size * 5, latent_size),
        (latent_size, latent_size * 5),     # decoder L4
        (latent_size * 5, latent_size * 10),
        (latent_size * 10, inp_size),
    ]
    params = {}
    for idx, (fan_in, fan_out) in enumerate(dims, start=1):
        key, kw, kb = jax.random.split(key, 3)
        bound = 1.0 / jnp.sqrt(jnp.array(fan_in, dtype=jnp.float32))
        params[f"w{idx}"] = jax.random.uniform(
            kw, (fan_in, fan_out), dtype=dtype, minval=-bound, maxval=bound)
        params[f"b{idx}"] = jax.random.uniform(
            kb, (1, fan_out), dtype=dtype, minval=-bound, maxval=bound)
    return params


def reference_forward(x, params):
    """Pure-JAX reference of the PyTorch forward pass."""
    h = x
    h = jnp.maximum(h @ params["w1"] + params["b1"], 0.0)
    h = jnp.maximum(h @ params["w2"] + params["b2"], 0.0)
    emb = h @ params["w3"] + params["b3"]
    h = jnp.maximum(emb @ params["w4"] + params["b4"], 0.0)
    h = jnp.maximum(h @ params["w5"] + params["b5"], 0.0)
    rec = h @ params["w6"] + params["b6"]
    return rec, emb


if __name__ == "__main__":
    key = jax.random.PRNGKey(0)
    batch = 512           # -> 2 grid steps of 256 rows (both TCs busy on v7x)
    inp_size = 256
    latent_size = 16

    key, kx, kp = jax.random.split(key, 3)
    x = jax.random.normal(kx, (batch, inp_size), dtype=jnp.float32)
    params = init_params(kp, inp_size, latent_size)

    rec, emb = mlp_autoencoder(x, params, batch_tile=256)
    jax.block_until_ready((rec, emb))

    rec_ref, emb_ref = reference_forward(x, params)
    assert rec.shape == (batch, inp_size) and emb.shape == (batch, latent_size)
    assert jnp.allclose(rec, rec_ref, atol=1e-4, rtol=1e-4)
    assert jnp.allclose(emb, emb_ref, atol=1e-4, rtol=1e-4)

    # Also exercise a small, non-tile-aligned batch (padding path).
    xs = x[:13]
    rec_s, emb_s = mlp_autoencoder(xs, params, batch_tile=256)
    jax.block_until_ready((rec_s, emb_s))
    rec_sr, emb_sr = reference_forward(xs, params)
    assert jnp.allclose(rec_s, rec_sr, atol=1e-4, rtol=1e-4)
    assert jnp.allclose(emb_s, emb_sr, atol=1e-4, rtol=1e-4)

    print("KERNEL_OK")
</pallas_src>

<mosaic_0001>
module attributes {stable_mosaic.version = 11 : i64} {
  func.func @_mlp_ae_kernel(%arg0: i32, %arg1: memref<256x256xf32, #tpu.memory_space<vmem>>, %arg2: memref<256x160xf32, #tpu.memory_space<vmem>>, %arg3: memref<1x160xf32, #tpu.memory_space<vmem>>, %arg4: memref<160x80xf32, #tpu.memory_space<vmem>>, %arg5: memref<1x80xf32, #tpu.memory_space<vmem>>, %arg6: memref<80x128xf32, #tpu.memory_space<vmem>>, %arg7: memref<1x128xf32, #tpu.memory_space<vmem>>, %arg8: memref<128x80xf32, #tpu.memory_space<vmem>>, %arg9: memref<1x80xf32, #tpu.memory_space<vmem>>, %arg10: memref<80x160xf32, #tpu.memory_space<vmem>>, %arg11: memref<1x160xf32, #tpu.memory_space<vmem>>, %arg12: memref<160x256xf32, #tpu.memory_space<vmem>>, %arg13: memref<1x256xf32, #tpu.memory_space<vmem>>, %arg14: memref<256x256xf32, #tpu.memory_space<vmem>>, %arg15: memref<256x128xf32, #tpu.memory_space<vmem>>) attributes {dimension_semantics = [#tpu.dimension_semantics<parallel>], iteration_bounds = array<i64: 2>, scalar_prefetch = 0 : i64, scratch_operands = 0 : i64, tpu.core_type = #tpu.core_type<tc>, window_params = [{transform_indices = @transform_0, window_bounds = array<i64: 256, 256>}, {pipeline_mode = #tpu.pipeline_mode<synchronous>, transform_indices = @transform_1, window_bounds = array<i64: 256, 160>}, {pipeline_mode = #tpu.pipeline_mode<synchronous>, transform_indices = @transform_2, window_bounds = array<i64: 1, 160>}, {pipeline_mode = #tpu.pipeline_mode<synchronous>, transform_indices = @transform_3, window_bounds = array<i64: 160, 80>}, {pipeline_mode = #tpu.pipeline_mode<synchronous>, transform_indices = @transform_4, window_bounds = array<i64: 1, 80>}, {pipeline_mode = #tpu.pipeline_mode<synchronous>, transform_indices = @transform_5, window_bounds = array<i64: 80, 128>}, {pipeline_mode = #tpu.pipeline_mode<synchronous>, transform_indices = @transform_6, window_bounds = array<i64: 1, 128>}, {pipeline_mode = #tpu.pipeline_mode<synchronous>, transform_indices = @transform_7, window_bounds = array<i64: 128, 80>}, {pipeline_mode = #tpu.pipeline_mode<synchronous>, transform_indices = @transform_8, window_bounds = array<i64: 1, 80>}, {pipeline_mode = #tpu.pipeline_mode<synchronous>, transform_indices = @transform_9, window_bounds = array<i64: 80, 160>}, {pipeline_mode = #tpu.pipeline_mode<synchronous>, transform_indices = @transform_10, window_bounds = array<i64: 1, 160>}, {pipeline_mode = #tpu.pipeline_mode<synchronous>, transform_indices = @transform_11, window_bounds = array<i64: 160, 256>}, {pipeline_mode = #tpu.pipeline_mode<synchronous>, transform_indices = @transform_12, window_bounds = array<i64: 1, 256>}, {transform_indices = @transform_13, window_bounds = array<i64: 256, 256>}, {transform_indices = @transform_14, window_bounds = array<i64: 256, 128>}]} {
    %c0 = arith.constant 0 : index
    %c0_0 = arith.constant 0 : index
    %0 = vector.load %arg1[%c0, %c0_0] : memref<256x256xf32, #tpu.memory_space<vmem>>, vector<256x256xf32>
    %c0_1 = arith.constant 0 : index
    %c0_2 = arith.constant 0 : index
    %1 = vector.load %arg2[%c0_1, %c0_2] : memref<256x160xf32, #tpu.memory_space<vmem>>, vector<256x160xf32>
    %cst = arith.constant dense<0.000000e+00> : vector<256x160xf32>
    %2 = tpu.matmul %0, %1, %cst {dimension_numbers = #tpu.dot_dimension_numbers<[1], [0], [0], [1], [0, 0, 1, 1], [], []>} : vector<256x256xf32>, vector<256x160xf32>, vector<256x160xf32> -> vector<256x160xf32>
    %c0_3 = arith.constant 0 : index
    %c0_4 = arith.constant 0 : index
    %3 = vector.load %arg3[%c0_3, %c0_4] : memref<1x160xf32, #tpu.memory_space<vmem>>, vector<1x160xf32>
    %4 = vector.broadcast %3 : vector<1x160xf32> to vector<256x160xf32>
    %5 = arith.addf %2, %4 : vector<256x160xf32>
    %cst_5 = arith.constant 0.000000e+00 : f32
    %6 = vector.broadcast %cst_5 : f32 to vector<256x160xf32>
    %7 = arith.maximumf %5, %6 : vector<256x160xf32>
    %c0_6 = arith.constant 0 : index
    %c0_7 = arith.constant 0 : index
    %8 = vector.load %arg4[%c0_6, %c0_7] : memref<160x80xf32, #tpu.memory_space<vmem>>, vector<160x80xf32>
    %cst_8 = arith.constant dense<0.000000e+00> : vector<256x80xf32>
    %9 = tpu.matmul %7, %8, %cst_8 {dimension_numbers = #tpu.dot_dimension_numbers<[1], [0], [0], [1], [0, 0, 1, 1], [], []>} : vector<256x160xf32>, vector<160x80xf32>, vector<256x80xf32> -> vector<256x80xf32>
    %c0_9 = arith.constant 0 : index
    %c0_10 = arith.constant 0 : index
    %10 = vector.load %arg5[%c0_9, %c0_10] : memref<1x80xf32, #tpu.memory_space<vmem>>, vector<1x80xf32>
    %11 = vector.broadcast %10 : vector<1x80xf32> to vector<256x80xf32>
    %12 = arith.addf %9, %11 : vector<256x80xf32>
    %cst_11 = arith.constant 0.000000e+00 : f32
    %13 = vector.broadcast %cst_11 : f32 to vector<256x80xf32>
    %14 = arith.maximumf %12, %13 : vector<256x80xf32>
    %c0_12 = arith.constant 0 : index
    %c0_13 = arith.constant 0 : index
    %15 = vector.load %arg6[%c0_12, %c0_13] : memref<80x128xf32, #tpu.memory_space<vmem>>, vector<80x128xf32>
    %cst_14 = arith.constant dense<0.000000e+00> : vector<256x128xf32>
    %16 = tpu.matmul %14, %15, %cst_14 {dimension_numbers = #tpu.dot_dimension_numbers<[1], [0], [0], [1], [0, 0, 1, 1], [], []>} : vector<256x80xf32>, vector<80x128xf32>, vector<256x128xf32> -> vector<256x128xf32>
    %c0_15 = arith.constant 0 : index
    %c0_16 = arith.constant 0 : index
    %17 = vector.load %arg7[%c0_15, %c0_16] : memref<1x128xf32, #tpu.memory_space<vmem>>, vector<1x128xf32>
    %18 = vector.broadcast %17 : vector<1x128xf32> to vector<256x128xf32>
    %19 = arith.addf %16, %18 : vector<256x128xf32>
    %c0_17 = arith.constant 0 : index
    %c0_18 = arith.constant 0 : index
    %20 = vector.load %arg15[%c0_17, %c0_18] : memref<256x128xf32, #tpu.memory_space<vmem>>, vector<256x128xf32>
    tpu.vector_store %arg15[%c0_17, %c0_18], %19 {strides = array<i32>} : memref<256x128xf32, #tpu.memory_space<vmem>>, vector<256x128xf32>,
    %c0_19 = arith.constant 0 : index
    %c0_20 = arith.constant 0 : index
    %21 = vector.load %arg8[%c0_19, %c0_20] : memref<128x80xf32, #tpu.memory_space<vmem>>, vector<128x80xf32>
    %cst_21 = arith.constant dense<0.000000e+00> : vector<256x80xf32>
    %22 = tpu.matmul %19, %21, %cst_21 {dimension_numbers = #tpu.dot_dimension_numbers<[1], [0], [0], [1], [0, 0, 1, 1], [], []>} : vector<256x128xf32>, vector<128x80xf32>, vector<256x80xf32> -> vector<256x80xf32>
    %c0_22 = arith.constant 0 : index
    %c0_23 = arith.constant 0 : index
    %23 = vector.load %arg9[%c0_22, %c0_23] : memref<1x80xf32, #tpu.memory_space<vmem>>, vector<1x80xf32>
    %24 = vector.broadcast %23 : vector<1x80xf32> to vector<256x80xf32>
    %25 = arith.addf %22, %24 : vector<256x80xf32>
    %cst_24 = arith.constant 0.000000e+00 : f32
    %26 = vector.broadcast %cst_24 : f32 to vector<256x80xf32>
    %27 = arith.maximumf %25, %26 : vector<256x80xf32>
    %c0_25 = arith.constant 0 : index
    %c0_26 = arith.constant 0 : index
    %28 = vector.load %arg10[%c0_25, %c0_26] : memref<80x160xf32, #tpu.memory_space<vmem>>, vector<80x160xf32>
    %cst_27 = arith.constant dense<0.000000e+00> : vector<256x160xf32>
    %29 = tpu.matmul %27, %28, %cst_27 {dimension_numbers = #tpu.dot_dimension_numbers<[1], [0], [0], [1], [0, 0, 1, 1], [], []>} : vector<256x80xf32>, vector<80x160xf32>, vector<256x160xf32> -> vector<256x160xf32>
    %c0_28 = arith.constant 0 : index
    %c0_29 = arith.constant 0 : index
    %30 = vector.load %arg11[%c0_28, %c0_29] : memref<1x160xf32, #tpu.memory_space<vmem>>, vector<1x160xf32>
    %31 = vector.broadcast %30 : vector<1x160xf32> to vector<256x160xf32>
    %32 = arith.addf %29, %31 : vector<256x160xf32>
    %cst_30 = arith.constant 0.000000e+00 : f32
    %33 = vector.broadcast %cst_30 : f32 to vector<256x160xf32>
    %34 = arith.maximumf %32, %33 : vector<256x160xf32>
    %c0_31 = arith.constant 0 : index
    %c0_32 = arith.constant 0 : index
    %35 = vector.load %arg12[%c0_31, %c0_32] : memref<160x256xf32, #tpu.memory_space<vmem>>, vector<160x256xf32>
    %cst_33 = arith.constant dense<0.000000e+00> : vector<256x256xf32>
    %36 = tpu.matmul %34, %35, %cst_33 {dimension_numbers = #tpu.dot_dimension_numbers<[1], [0], [0], [1], [0, 0, 1, 1], [], []>} : vector<256x160xf32>, vector<160x256xf32>, vector<256x256xf32> -> vector<256x256xf32>
    %c0_34 = arith.constant 0 : index
    %c0_35 = arith.constant 0 : index
    %37 = vector.load %arg13[%c0_34, %c0_35] : memref<1x256xf32, #tpu.memory_space<vmem>>, vector<1x256xf32>
    %38 = vector.broadcast %37 : vector<1x256xf32> to vector<256x256xf32>
    %39 = arith.addf %36, %38 : vector<256x256xf32>
    %c0_36 = arith.constant 0 : index
    %c0_37 = arith.constant 0 : index
    %40 = vector.load %arg14[%c0_36, %c0_37] : memref<256x256xf32, #tpu.memory_space<vmem>>, vector<256x256xf32>
    tpu.vector_store %arg14[%c0_36, %c0_37], %39 {strides = array<i32>} : memref<256x256xf32, #tpu.memory_space<vmem>>, vector<256x256xf32>,
    return
  }
  func.func @transform_0(%arg0: i32) -> (i32, i32) {
    %c0_i32 = arith.constant 0 : i32
    %c0_i32_0 = arith.constant 0 : i32
    return %arg0, %c0_i32 : i32, i32
  }
  func.func @transform_1(%arg0: i32) -> (i32, i32) {
    %c0_i32 = arith.constant 0 : i32
    %c0_i32_0 = arith.constant 0 : i32
    %c0_i32_1 = arith.constant 0 : i32
    return %c0_i32, %c0_i32_0 : i32, i32
  }
  func.func @transform_2(%arg0: i32) -> (i32, i32) {
    %c0_i32 = arith.constant 0 : i32
    %c0_i32_0 = arith.constant 0 : i32
    %c0_i32_1 = arith.constant 0 : i32
    return %c0_i32, %c0_i32_0 : i32, i32
  }
  func.func @transform_3(%arg0: i32) -> (i32, i32) {
    %c0_i32 = arith.constant 0 : i32
    %c0_i32_0 = arith.constant 0 : i32
    %c0_i32_1 = arith.constant 0 : i32
    return %c0_i32, %c0_i32_0 : i32, i32
  }
  func.func @transform_4(%arg0: i32) -> (i32, i32) {
    %c0_i32 = arith.constant 0 : i32
    %c0_i32_0 = arith.constant 0 : i32
    %c0_i32_1 = arith.constant 0 : i32
    return %c0_i32, %c0_i32_0 : i32, i32
  }
  func.func @transform_5(%arg0: i32) -> (i32, i32) {
    %c0_i32 = arith.constant 0 : i32
    %c0_i32_0 = arith.constant 0 : i32
    %c0_i32_1 = arith.constant 0 : i32
    return %c0_i32, %c0_i32_0 : i32, i32
  }
  func.func @transform_6(%arg0: i32) -> (i32, i32) {
    %c0_i32 = arith.constant 0 : i32
    %c0_i32_0 = arith.constant 0 : i32
    %c0_i32_1 = arith.constant 0 : i32
    return %c0_i32, %c0_i32_0 : i32, i32
  }
  func.func @transform_7(%arg0: i32) -> (i32, i32) {
    %c0_i32 = arith.constant 0 : i32
    %c0_i32_0 = arith.constant 0 : i32
    %c0_i32_1 = arith.constant 0 : i32
    return %c0_i32, %c0_i32_0 : i32, i32
  }
  func.func @transform_8(%arg0: i32) -> (i32, i32) {
    %c0_i32 = arith.constant 0 : i32
    %c0_i32_0 = arith.constant 0 : i32
    %c0_i32_1 = arith.constant 0 : i32
    return %c0_i32, %c0_i32_0 : i32, i32
  }
  func.func @transform_9(%arg0: i32) -> (i32, i32) {
    %c0_i32 = arith.constant 0 : i32
    %c0_i32_0 = arith.constant 0 : i32
    %c0_i32_1 = arith.constant 0 : i32
    return %c0_i32, %c0_i32_0 : i32, i32
  }
  func.func @transform_10(%arg0: i32) -> (i32, i32) {
    %c0_i32 = arith.constant 0 : i32
    %c0_i32_0 = arith.constant 0 : i32
    %c0_i32_1 = arith.constant 0 : i32
    return %c0_i32, %c0_i32_0 : i32, i32
  }
  func.func @transform_11(%arg0: i32) -> (i32, i32) {
    %c0_i32 = arith.constant 0 : i32
    %c0_i32_0 = arith.constant 0 : i32
    %c0_i32_1 = arith.constant 0 : i32
    return %c0_i32, %c0_i32_0 : i32, i32
  }
  func.func @transform_12(%arg0: i32) -> (i32, i32) {
    %c0_i32 = arith.constant 0 : i32
    %c0_i32_0 = arith.constant 0 : i32
    %c0_i32_1 = arith.constant 0 : i32
    return %c0_i32, %c0_i32_0 : i32, i32
  }
  func.func @transform_13(%arg0: i32) -> (i32, i32) {
    %c0_i32 = arith.constant 0 : i32
    %c0_i32_0 = arith.constant 0 : i32
    return %arg0, %c0_i32 : i32, i32
  }
  func.func @transform_14(%arg0: i32) -> (i32, i32) {
    %c0_i32 = arith.constant 0 : i32
    %c0_i32_0 = arith.constant 0 : i32
    return %arg0, %c0_i32 : i32, i32
  }
}

</mosaic_0001>

<llo_original>
// kernel: mlp_autoencoder.1
$region0: #{mlp_autoencoder.1}
  #allocation0 [shape = 'u32[]', space=smem, size = 0x4, offset = 0x4, fixed_abs, tag = 'smem constant byte address 0x4 - core index']
  #allocation1 [shape = 'u32[144,128]{1,0:T(1,128)}', space=vmem, size = 0x12000, scoped, tag = 'internal scratch']
  %s0 = inlined_call_operand.vmem [shape: f32[512,256], index: 0, kind: input, shape index: {}]
  %s1 = inlined_call_operand.vmem [shape: f32[256,160], index: 1, kind: input, shape index: {}]
  %s2 = inlined_call_operand.vmem [shape: f32[1,160], index: 2, kind: input, shape index: {}]
  %s3 = inlined_call_operand.vmem [shape: f32[160,80], index: 3, kind: input, shape index: {}]
  %s4 = inlined_call_operand.vmem [shape: f32[1,80], index: 4, kind: input, shape index: {}]
  %s5 = inlined_call_operand.vmem [shape: f32[80,128], index: 5, kind: input, shape index: {}]
  %s6 = inlined_call_operand.vmem [shape: f32[1,128], index: 6, kind: input, shape index: {}]
  %s7 = inlined_call_operand.vmem [shape: f32[128,80], index: 7, kind: input, shape index: {}]
  %s8 = inlined_call_operand.vmem [shape: f32[1,80], index: 8, kind: input, shape index: {}]
  %s9 = inlined_call_operand.hbm [shape: f32[80,160], index: 9, kind: input, shape index: {}]
  %s10 = inlined_call_operand.vmem [shape: f32[1,160], index: 10, kind: input, shape index: {}]
  %s11 = inlined_call_operand.hbm [shape: f32[160,256], index: 11, kind: input, shape index: {}]
  %s12 = inlined_call_operand.vmem [shape: f32[1,256], index: 12, kind: input, shape index: {}]
  %s13 = inlined_call_operand.hbm [shape: f32[512,256], index: 13, kind: output, shape index: {0}]
  %s14 = inlined_call_operand.vmem [shape: f32[512,128], index: 14, kind: output, shape index: {1}]
  %15 = xla_tuple %s13, %s14
  %s16 = sld [smem:[#allocation0]]
  $region101: #{mlp_autoencoder.1} parent=0
    _
  %s18 = ssub.s32 1, %s16
  %s19 = scalar_select 0, %s18, %s16
  $region1: #{mlp_autoencoder.1} parent=0
    #allocation2 [shape = 'u8[81920]{0}', space=vmem, size = 0x14000, scoped, tag = 'input window, operand 9, single buffered']
    #allocation3 [shape = 's32[2]{0}', space=sflag, size = 0x8, scoped, tag = 'scoped memory for mlp_autoencoder.1']
    #allocation4 [shape = 's32[2]{0}', space=sflag, size = 0x8, scoped, tag = 'scoped memory for mlp_autoencoder.1']
    #allocation5 [shape = 'u8[163840]{0}', space=vmem, size = 0x28000, scoped, tag = 'input window, operand 11, single buffered']
    #allocation6 [shape = 's32[1]{0}', space=sflag, size = 0x4, scoped, tag = 'scoped memory for mlp_autoencoder.1']
    #allocation7 [shape = 'u8[524288]{0}', space=vmem, size = 0x80000, scoped, tag = 'output window, operand 0']
    %20 = vsyncpa [#allocation3], 0
    %21 = vsyncpa [#allocation6], 0
    %22 = vsyncpa [#allocation4], 0
    %s23 = scalar_lea.sflag [#allocation4], 1
    %24 = vsyncpa %s23, 0
    loop: start=0, step=1, limit=4
    $region2: #{mlp_autoencoder.1} parent=1 // loop_pre_header
      _
    $region3: #{mlp_autoencoder.1} parent=1 // loop_header
      %s26 = sphi 0, %s30
      %p27 = scmp.ge.s32.totalorder %s26, 4
      %s36 = sphi 0, %s38
      %s39 = sphi 0, %s36
      %s40 = sphi 0, %s39
      %s56 = sphi 0, %s40
      %s60 = sphi 0, %s60
      %s62 = sphi 0, %s60
      %s63 = sphi 0, %s62
      %s77 = sphi 0, %s63
      %s81 = sphi 0, %s81
      %s83 = sphi 0, %s81
      %s84 = sphi 0, %s83
      %s98 = sphi 0, %s84
      %s102 = sphi 0, %s102
      %s104 = sphi 0, %s102
      %s105 = sphi 0, %s104
      %s119 = sphi 0, %s105
      %s123 = sphi 0, %s123
      %s125 = sphi 0, %s123
      %s126 = sphi 0, %s125
      %s140 = sphi 0, %s126
      %s144 = sphi 0, %s144
      %s146 = sphi 0, %s144
      %s147 = sphi 0, %s146
      %s161 = sphi 0, %s147
      %s165 = sphi 0, %s165
      %s167 = sphi 0, %s165
      %s168 = sphi 0, %s167
      %s182 = sphi 0, %s168
      %s186 = sphi 0, %s186
      %s188 = sphi 0, %s186
      %s189 = sphi 0, %s188
      %s203 = sphi 0, %s189
      %s207 = sphi 0, %s207
      %s209 = sphi 0, %s207
      %s210 = sphi 0, %s209
      %s224 = sphi 0, %s210
      %s228 = sphi 0, %s228
      %s230 = sphi 0, %s228
      %s231 = sphi 0, %s230
      %s245 = sphi 0, %s231
      %s249 = sphi 0, %s249
      %s251 = sphi 0, %s249
      %s252 = sphi 0, %s251
      %s266 = sphi 0, %s252
      %s270 = sphi 0, %s270
      %s272 = sphi 0, %s270
      %s273 = sphi 0, %s272
      %s287 = sphi 0, %s273
      %s291 = sphi 0, %s291
      %s293 = sphi 0, %s291
      %s294 = sphi 0, %s293
      %s308 = sphi 0, %s294
      %s314 = sphi 0, %s316
      %s317 = sphi 0, %s314
      %s318 = sphi 0, %s317
      %s334 = sphi 0, %s318
      %s340 = sphi 0, %s342
      %s343 = sphi 0, %s340
      %s344 = sphi 0, %s343
      %s360 = sphi 0, %s344
    $region4: #{mlp_autoencoder.1} parent=1 // loop_header_branch
      %29 = sbr.rel (%p27) target = $region8
    $region5: #{mlp_autoencoder.1} parent=1 // loop_body
      %s31 = ssub.s32 %s26, 1
      %s32 = ssub.s32 %s26, 2
      %s33 = sadd.s32 %s26, 1
      %s34 = ssub.s32 %s26, %s33
      %p35 = scmp.eq.s32.totalorder %s34, 0
      %s37 = sadd.s32 %s36, 1
      %s38 = scalar_select %p35, %s36, %s37
      %p41 = pneg %p35
      %p42 = scmp.eq.s32.totalorder %s26, 1
      %p43 = por %p41, %p42
      %p44 = scmp.ne.s32.totalorder %s36, %s39
      %p45 = scmp.eq.s32.totalorder %s26, 0
      %p46 = por %p44, %p45
      %p47 = scmp.ne.s32.totalorder %s36, %s39
      %p48 = scmp.eq.s32.totalorder %s31, 1
      %p49 = por %p47, %p48
      %p50 = scmp.ne.s32.totalorder %s39, %s40
      %p51 = scmp.eq.s32.totalorder %s31, 0
      %p52 = por %p50, %p51
      %p53 = scmp.ne.s32.totalorder %s39, %s40
      %p54 = scmp.eq.s32.totalorder %s32, 1
      %p55 = por %p53, %p54
      %p57 = scmp.ne.s32.totalorder %s40, %s56
      %p58 = scmp.eq.s32.totalorder %s32, 0
      %p59 = por %p57, %p58
      %s61 = sadd.s32 %s60, 1
      %p64 = scmp.eq.s32.totalorder %s26, 1
      %p65 = scmp.ne.s32.totalorder %s60, %s62
      %p66 = scmp.eq.s32.totalorder %s26, 0
      %p67 = por %p65, %p66
      %p68 = scmp.ne.s32.totalorder %s60, %s62
      %p69 = scmp.eq.s32.totalorder %s31, 1
      %p70 = por %p68, %p69
      %p71 = scmp.ne.s32.totalorder %s62, %s63
      %p72 = scmp.eq.s32.totalorder %s31, 0
      %p73 = por %p71, %p72
      %p74 = scmp.ne.s32.totalorder %s62, %s63
      %p75 = scmp.eq.s32.totalorder %s32, 1
      %p76 = por %p74, %p75
      %p78 = scmp.ne.s32.totalorder %s63, %s77
      %p79 = scmp.eq.s32.totalorder %s32, 0
      %p80 = por %p78, %p79
      %s82 = sadd.s32 %s81, 1
      %p85 = scmp.eq.s32.totalorder %s26, 1
      %p86 = scmp.ne.s32.totalorder %s81, %s83
      %p87 = scmp.eq.s32.totalorder %s26, 0
      %p88 = por %p86, %p87
      %p89 = scmp.ne.s32.totalorder %s81, %s83
      %p90 = scmp.eq.s32.totalorder %s31, 1
      %p91 = por %p89, %p90
      %p92 = scmp.ne.s32.totalorder %s83, %s84
      %p93 = scmp.eq.s32.totalorder %s31, 0
      %p94 = por %p92, %p93
      %p95 = scmp.ne.s32.totalorder %s83, %s84
      %p96 = scmp.eq.s32.totalorder %s32, 1
      %p97 = por %p95, %p96
      %p99 = scmp.ne.s32.totalorder %s84, %s98
      %p100 = scmp.eq.s32.totalorder %s32, 0
      %p101 = por %p99, %p100
      %s103 = sadd.s32 %s102, 1
      %p106 = scmp.eq.s32.totalorder %s26, 1
      %p107 = scmp.ne.s32.totalorder %s102, %s104
      %p108 = scmp.eq.s32.totalorder %s26, 0
      %p109 = por %p107, %p108
      %p110 = scmp.ne.s32.totalorder %s102, %s104
      %p111 = scmp.eq.s32.totalorder %s31, 1
      %p112 = por %p110, %p111
      %p113 = scmp.ne.s32.totalorder %s104, %s105
      %p114 = scmp.eq.s32.totalorder %s31, 0
      %p115 = por %p113, %p114
      %p116 = scmp.ne.s32.totalorder %s104, %s105
      %p117 = scmp.eq.s32.totalorder %s32, 1
      %p118 = por %p116, %p117
      %p120 = scmp.ne.s32.totalorder %s105, %s119
      %p121 = scmp.eq.s32.totalorder %s32, 0
      %p122 = por %p120, %p121
      %s124 = sadd.s32 %s123, 1
      %p127 = scmp.eq.s32.totalorder %s26, 1
      %p128 = scmp.ne.s32.totalorder %s123, %s125
      %p129 = scmp.eq.s32.totalorder %s26, 0
      %p130 = por %p128, %p129
      %p131 = scmp.ne.s32.totalorder %s123, %s125
      %p132 = scmp.eq.s32.totalorder %s31, 1
      %p133 = por %p131, %p132
      %p134 = scmp.ne.s32.totalorder %s125, %s126
      %p135 = scmp.eq.s32.totalorder %s31, 0
      %p136 = por %p134, %p135
      %p137 = scmp.ne.s32.totalorder %s125, %s126
      %p138 = scmp.eq.s32.totalorder %s32, 1
      %p139 = por %p137, %p138
      %p141 = scmp.ne.s32.totalorder %s126, %s140
      %p142 = scmp.eq.s32.totalorder %s32, 0
      %p143 = por %p141, %p142
      %s145 = sadd.s32 %s144, 1
      %p148 = scmp.eq.s32.totalorder %s26, 1
      %p149 = scmp.ne.s32.totalorder %s144, %s146
      %p150 = scmp.eq.s32.totalorder %s26, 0
      %p151 = por %p149, %p150
      %p152 = scmp.ne.s32.totalorder %s144, %s146
      %p153 = scmp.eq.s32.totalorder %s31, 1
      %p154 = por %p152, %p153
      %p155 = scmp.ne.s32.totalorder %s146, %s147
      %p156 = scmp.eq.s32.totalorder %s31, 0
      %p157 = por %p155, %p156
      %p158 = scmp.ne.s32.totalorder %s146, %s147
      %p159 = scmp.eq.s32.totalorder %s32, 1
      %p160 = por %p158, %p159
      %p162 = scmp.ne.s32.totalorder %s147, %s161
      %p163 = scmp.eq.s32.totalorder %s32, 0
      %p164 = por %p162, %p163
      %s166 = sadd.s32 %s165, 1
      %p169 = scmp.eq.s32.totalorder %s26, 1
      %p170 = scmp.ne.s32.totalorder %s165, %s167
      %p171 = scmp.eq.s32.totalorder %s26, 0
      %p172 = por %p170, %p171
      %p173 = scmp.ne.s32.totalorder %s165, %s167
      %p174 = scmp.eq.s32.totalorder %s31, 1
      %p175 = por %p173, %p174
      %p176 = scmp.ne.s32.totalorder %s167, %s168
      %p177 = scmp.eq.s32.totalorder %s31, 0
      %p178 = por %p176, %p177
      %p179 = scmp.ne.s32.totalorder %s167, %s168
      %p180 = scmp.eq.s32.totalorder %s32, 1
      %p181 = por %p179, %p180
      %p183 = scmp.ne.s32.totalorder %s168, %s182
      %p184 = scmp.eq.s32.totalorder %s32, 0
      %p185 = por %p183, %p184
      %s187 = sadd.s32 %s186, 1
      %p190 = scmp.eq.s32.totalorder %s26, 1
      %p191 = scmp.ne.s32.totalorder %s186, %s188
      %p192 = scmp.eq.s32.totalorder %s26, 0
      %p193 = por %p191, %p192
      %p194 = scmp.ne.s32.totalorder %s186, %s188
      %p195 = scmp.eq.s32.totalorder %s31, 1
      %p196 = por %p194, %p195
      %p197 = scmp.ne.s32.totalorder %s188, %s189
      %p198 = scmp.eq.s32.totalorder %s31, 0
      %p199 = por %p197, %p198
      %p200 = scmp.ne.s32.totalorder %s188, %s189
      %p201 = scmp.eq.s32.totalorder %s32, 1
      %p202 = por %p200, %p201
      %p204 = scmp.ne.s32.totalorder %s189, %s203
      %p205 = scmp.eq.s32.totalorder %s32, 0
      %p206 = por %p204, %p205
      %s208 = sadd.s32 %s207, 1
      %p211 = scmp.eq.s32.totalorder %s26, 1
      %p212 = scmp.ne.s32.totalorder %s207, %s209
      %p213 = scmp.eq.s32.totalorder %s26, 0
      %p214 = por %p212, %p213
      %p215 = scmp.ne.s32.totalorder %s207, %s209
      %p216 = scmp.eq.s32.totalorder %s31, 1
      %p217 = por %p215, %p216
      %p218 = scmp.ne.s32.totalorder %s209, %s210
      %p219 = scmp.eq.s32.totalorder %s31, 0
      %p220 = por %p218, %p219
      %p221 = scmp.ne.s32.totalorder %s209, %s210
      %p222 = scmp.eq.s32.totalorder %s32, 1
      %p223 = por %p221, %p222
      %p225 = scmp.ne.s32.totalorder %s210, %s224
      %p226 = scmp.eq.s32.totalorder %s32, 0
      %p227 = por %p225, %p226
      %s229 = sadd.s32 %s228, 1
      %p232 = scmp.eq.s32.totalorder %s26, 1
      %p233 = scmp.ne.s32.totalorder %s228, %s230
      %p234 = scmp.eq.s32.totalorder %s26, 0
      %p235 = por %p233, %p234
      %p236 = scmp.ne.s32.totalorder %s228, %s230
      %p237 = scmp.eq.s32.totalorder %s31, 1
      %p238 = por %p236, %p237
      %p239 = scmp.ne.s32.totalorder %s230, %s231
      %p240 = scmp.eq.s32.totalorder %s31, 0
      %p241 = por %p239, %p240
      %p242 = scmp.ne.s32.totalorder %s230, %s231
      %p243 = scmp.eq.s32.totalorder %s32, 1
      %p244 = por %p242, %p243
      %p246 = scmp.ne.s32.totalorder %s231, %s245
      %p247 = scmp.eq.s32.totalorder %s32, 0
      %p248 = por %p246, %p247
      %s250 = sadd.s32 %s249, 1
      %p253 = scmp.eq.s32.totalorder %s26, 1
      %p254 = scmp.ne.s32.totalorder %s249, %s251
      %p255 = scmp.eq.s32.totalorder %s26, 0
      %p256 = por %p254, %p255
      %p257 = scmp.ne.s32.totalorder %s249, %s251
      %p258 = scmp.eq.s32.totalorder %s31, 1
      %p259 = por %p257, %p258
      %p260 = scmp.ne.s32.totalorder %s251, %s252
      %p261 = scmp.eq.s32.totalorder %s31, 0
      %p262 = por %p260, %p261
      %p263 = scmp.ne.s32.totalorder %s251, %s252
      %p264 = scmp.eq.s32.totalorder %s32, 1
      %p265 = por %p263, %p264
      %p267 = scmp.ne.s32.totalorder %s252, %s266
      %p268 = scmp.eq.s32.totalorder %s32, 0
      %p269 = por %p267, %p268
      %s271 = sadd.s32 %s270, 1
      %p274 = scmp.eq.s32.totalorder %s26, 1
      %p275 = scmp.ne.s32.totalorder %s270, %s272
      %p276 = scmp.eq.s32.totalorder %s26, 0
      %p277 = por %p275, %p276
      %p278 = scmp.ne.s32.totalorder %s270, %s272
      %p279 = scmp.eq.s32.totalorder %s31, 1
      %p280 = por %p278, %p279
      %p281 = scmp.ne.s32.totalorder %s272, %s273
      %p282 = scmp.eq.s32.totalorder %s31, 0
      %p283 = por %p281, %p282
      %p284 = scmp.ne.s32.totalorder %s272, %s273
      %p285 = scmp.eq.s32.totalorder %s32, 1
      %p286 = por %p284, %p285
      %p288 = scmp.ne.s32.totalorder %s273, %s287
      %p289 = scmp.eq.s32.totalorder %s32, 0
      %p290 = por %p288, %p289
      %s292 = sadd.s32 %s291, 1
      %p295 = scmp.eq.s32.totalorder %s26, 1
      %p296 = scmp.ne.s32.totalorder %s291, %s293
      %p297 = scmp.eq.s32.totalorder %s26, 0
      %p298 = por %p296, %p297
      %p299 = scmp.ne.s32.totalorder %s291, %s293
      %p300 = scmp.eq.s32.totalorder %s31, 1
      %p301 = por %p299, %p300
      %p302 = scmp.ne.s32.totalorder %s293, %s294
      %p303 = scmp.eq.s32.totalorder %s31, 0
      %p304 = por %p302, %p303
      %p305 = scmp.ne.s32.totalorder %s293, %s294
      %p306 = scmp.eq.s32.totalorder %s32, 1
      %p307 = por %p305, %p306
      %p309 = scmp.ne.s32.totalorder %s294, %s308
      %p310 = scmp.eq.s32.totalorder %s32, 0
      %p311 = por %p309, %p310
      %s312 = ssub.s32 %s26, %s33
      %p313 = scmp.eq.s32.totalorder %s312, 0
      %s315 = sadd.s32 %s314, 1
      %s316 = scalar_select %p313, %s314, %s315
      %p319 = pneg %p313
      %p320 = scmp.eq.s32.totalorder %s26, 1
      %p321 = por %p319, %p320
      %p322 = scmp.ne.s32.totalorder %s314, %s317
      %p323 = scmp.eq.s32.totalorder %s26, 0
      %p324 = por %p322, %p323
      %p325 = scmp.ne.s32.totalorder %s314, %s317
      %p326 = scmp.eq.s32.totalorder %s31, 1
      %p327 = por %p325, %p326
      %p328 = scmp.ne.s32.totalorder %s317, %s318
      %p329 = scmp.eq.s32.totalorder %s31, 0
      %p330 = por %p328, %p329
      %p331 = scmp.ne.s32.totalorder %s317, %s318
      %p332 = scmp.eq.s32.totalorder %s32, 1
      %p333 = por %p331, %p332
      %p335 = scmp.ne.s32.totalorder %s318, %s334
      %p336 = scmp.eq.s32.totalorder %s32, 0
      %p337 = por %p335, %p336
      %s338 = ssub.s32 %s26, %s33
      %p339 = scmp.eq.s32.totalorder %s338, 0
      %s341 = sadd.s32 %s340, 1
      %s342 = scalar_select %p339, %s340, %s341
      %p345 = pneg %p339
      %p346 = scmp.eq.s32.totalorder %s26, 1
      %p347 = por %p345, %p346
      %p348 = scmp.ne.s32.totalorder %s340, %s343
      %p349 = scmp.eq.s32.totalorder %s26, 0
      %p350 = por %p348, %p349
      %p351 = scmp.ne.s32.totalorder %s340, %s343
      %p352 = scmp.eq.s32.totalorder %s31, 1
      %p353 = por %p351, %p352
      %p354 = scmp.ne.s32.totalorder %s343, %s344
      %p355 = scmp.eq.s32.totalorder %s31, 0
      %p356 = por %p354, %p355
      %p357 = scmp.ne.s32.totalorder %s343, %s344
      %p358 = scmp.eq.s32.totalorder %s32, 1
      %p359 = por %p357, %p358
      %p361 = scmp.ne.s32.totalorder %s344, %s360
      %p362 = scmp.eq.s32.totalorder %s32, 0
      %p363 = por %p361, %p362
      %p364 = scmp.le.s32.totalorder 1, %s26
      %p365 = scmp.lt.s32.totalorder %s26, 3
      %p366 = pnand %p364, %p365
      %p367 = pneg %p366
      // Predicated region
      $region9: #{mlp_autoencoder.1} parent=5 // pred_check
        _
      $region10: #{mlp_autoencoder.1} parent=5 // pred_check_branch
        %369 = sbr.rel (%p366) target = $region12
      $region11: #{mlp_autoencoder.1} parent=5 // pred_region
        %s370 = ssub.s32 %s26, 1
        // Predicated region
        $region13: #{mlp_autoencoder.1} parent=11 // pred_check
          %p371 = pneg %p73
        $region14: #{mlp_autoencoder.1} parent=11 // pred_check_branch
          %373 = sbr.rel (%p371) target = $region16
        $region15: #{mlp_autoencoder.1} parent=11 // pred_region
          _
        $region16: #{mlp_autoencoder.1} parent=11 // pred_fallthru
          _
        // Predicated region
        $region17: #{mlp_autoencoder.1} parent=11 // pred_check
          %p374 = pneg %p94
        $region18: #{mlp_autoencoder.1} parent=11 // pred_check_branch
          %376 = sbr.rel (%p374) target = $region20
        $region19: #{mlp_autoencoder.1} parent=11 // pred_region
          _
        $region20: #{mlp_autoencoder.1} parent=11 // pred_fallthru
          _
        // Predicated region
        $region21: #{mlp_autoencoder.1} parent=11 // pred_check
          %p377 = pneg %p115
        $region22: #{mlp_autoencoder.1} parent=11 // pred_check_branch
          %379 = sbr.rel (%p377) target = $region24
        $region23: #{mlp_autoencoder.1} parent=11 // pred_region
          _
        $region24: #{mlp_autoencoder.1} parent=11 // pred_fallthru
          _
        // Predicated region
        $region25: #{mlp_autoencoder.1} parent=11 // pred_check
          %p380 = pneg %p136
        $region26: #{mlp_autoencoder.1} parent=11 // pred_check_branch
          %382 = sbr.rel (%p380) target = $region28
        $region27: #{mlp_autoencoder.1} parent=11 // pred_region
          _
        $region28: #{mlp_autoencoder.1} parent=11 // pred_fallthru
          _
        // Predicated region
        $region29: #{mlp_autoencoder.1} parent=11 // pred_check
          %p383 = pneg %p157
        $region30: #{mlp_autoencoder.1} parent=11 // pred_check_branch
          %385 = sbr.rel (%p383) target = $region32
        $region31: #{mlp_autoencoder.1} parent=11 // pred_region
          _
        $region32: #{mlp_autoencoder.1} parent=11 // pred_fallthru
          _
        // Predicated region
        $region33: #{mlp_autoencoder.1} parent=11 // pred_check
          %p386 = pneg %p178
        $region34: #{mlp_autoencoder.1} parent=11 // pred_check_branch
          %388 = sbr.rel (%p386) target = $region36
        $region35: #{mlp_autoencoder.1} parent=11 // pred_region
          _
        $region36: #{mlp_autoencoder.1} parent=11 // pred_fallthru
          _
        // Predicated region
        $region37: #{mlp_autoencoder.1} parent=11 // pred_check
          %p389 = pneg %p199
        $region38: #{mlp_autoencoder.1} parent=11 // pred_check_branch
          %391 = sbr.rel (%p389) target = $region40
        $region39: #{mlp_autoencoder.1} parent=11 // pred_region
          _
        $region40: #{mlp_autoencoder.1} parent=11 // pred_fallthru
          _
        // Predicated region
        $region41: #{mlp_autoencoder.1} parent=11 // pred_check
          %p392 = pneg %p220
        $region42: #{mlp_autoencoder.1} parent=11 // pred_check_branch
          %394 = sbr.rel (%p392) target = $region44
        $region43: #{mlp_autoencoder.1} parent=11 // pred_region
          _
        $region44: #{mlp_autoencoder.1} parent=11 // pred_fallthru
          _
        // Predicated region
        $region45: #{mlp_autoencoder.1} parent=11 // pred_check
          %p395 = pneg %p241
        $region46: #{mlp_autoencoder.1} parent=11 // pred_check_branch
          %397 = sbr.rel (%p395) target = $region48
        $region47: #{mlp_autoencoder.1} parent=11 // pred_region
          %s399 = ssub.s32 2560, 2560
          %400 = vsyncadd [#allocation3], %s399
          %s401 = sshll.u32 [#allocation2], 4
          %s402 = int_to_ptr.vmem [resolvable:$true] %s401
          %407 = dma.hbm_to_vmem [thread:$0]  %s9, 2560, %s402, [#allocation3], 256, 256, 16
        $region48: #{mlp_autoencoder.1} parent=11 // pred_fallthru
          _
        // Predicated region
        $region49: #{mlp_autoencoder.1} parent=11 // pred_check
          %p408 = pneg %p262
        $region50: #{mlp_autoencoder.1} parent=11 // pred_check_branch
          %410 = sbr.rel (%p408) target = $region52
        $region51: #{mlp_autoencoder.1} parent=11 // pred_region
          _
        $region52: #{mlp_autoencoder.1} parent=11 // pred_fallthru
          _
        // Predicated region
        $region53: #{mlp_autoencoder.1} parent=11 // pred_check
          %p411 = pneg %p283
        $region54: #{mlp_autoencoder.1} parent=11 // pred_check_branch
          %413 = sbr.rel (%p411) target = $region56
        $region55: #{mlp_autoencoder.1} parent=11 // pred_region
          %s415 = ssub.s32 5120, 5120
          %416 = vsyncadd [#allocation6], %s415
          %s417 = sshll.u32 [#allocation5], 4
          %s418 = int_to_ptr.vmem [resolvable:$true] %s417
          %423 = dma.hbm_to_vmem [thread:$0]  %s11, 5120, %s418, [#allocation6], 256, 256, 16
        $region56: #{mlp_autoencoder.1} parent=11 // pred_fallthru
          _
        // Predicated region
        $region57: #{mlp_autoencoder.1} parent=11 // pred_check
          %p424 = pneg %p304
        $region58: #{mlp_autoencoder.1} parent=11 // pred_check_branch
          %426 = sbr.rel (%p424) target = $region60
        $region59: #{mlp_autoencoder.1} parent=11 // pred_region
          _
        $region60: #{mlp_autoencoder.1} parent=11 // pred_fallthru
          _
      $region12: #{mlp_autoencoder.1} parent=5 // pred_fallthru
        _
      %p427 = scmp.lt.s32.totalorder %s26, 2
      // Predicated region
      $region61: #{mlp_autoencoder.1} parent=5 // pred_check
        %p428 = pneg %p427
      $region62: #{mlp_autoencoder.1} parent=5 // pred_check_branch
        %430 = sbr.rel (%p428) target = $region64
      $region63: #{mlp_autoencoder.1} parent=5 // pred_region
        // Predicated region
        $region65: #{mlp_autoencoder.1} parent=63 // pred_check
          %p431 = pneg %p46
        $region66: #{mlp_autoencoder.1} parent=63 // pred_check_branch
          %433 = sbr.rel (%p431) target = $region68
        $region67: #{mlp_autoencoder.1} parent=63 // pred_region
          %s434 = smul.u32 32, %s26
          %p435 = scmp.lt.s32.totalorder %s434, 63
          %s436 = scalar_select %p435, %s434, 63
          %s437 = smul.addr %s436, 2
          %s438 = smul.addr %s437, 8
          %s439 = scalar_lea.vmem %s0, %s438
          %s440 = smul.u32 32, %s26
        $region68: #{mlp_autoencoder.1} parent=63 // pred_fallthru
          _
      $region64: #{mlp_autoencoder.1} parent=5 // pred_fallthru
        _
      %p441 = scmp.le.s32.totalorder 1, %s26
      %p442 = scmp.lt.s32.totalorder %s26, 3
      %p443 = pnand %p441, %p442
      %p444 = pneg %p443
      // Predicated region
      $region69: #{mlp_autoencoder.1} parent=5 // pred_check
        _
      $region70: #{mlp_autoencoder.1} parent=5 // pred_check_branch
        %446 = sbr.rel (%p443) target = $region72
      $region71: #{mlp_autoencoder.1} parent=5 // pred_region
        %s447 = ssub.s32 %s26, 1
        // Predicated region
        $region73: #{mlp_autoencoder.1} parent=71 // pred_check
          %p448 = pneg %p241
        $region74: #{mlp_autoencoder.1} parent=71 // pred_check_branch
          %450 = sbr.rel (%p448) target = $region76
        $region75: #{mlp_autoencoder.1} parent=71 // pred_region
          %451 = dma.done [#allocation3], 2560
        $region76: #{mlp_autoencoder.1} parent=71 // pred_fallthru
          _
        // Predicated region
        $region77: #{mlp_autoencoder.1} parent=71 // pred_check
          %p452 = pneg %p283
        $region78: #{mlp_autoencoder.1} parent=71 // pred_check_branch
          %454 = sbr.rel (%p452) target = $region80
        $region79: #{mlp_autoencoder.1} parent=71 // pred_region
          %455 = dma.done [#allocation6], 5120
        $region80: #{mlp_autoencoder.1} parent=71 // pred_fallthru
          _
        %s456 = smul.u32 32, %s31
        %p457 = scmp.lt.s32.totalorder %s456, 63
        %s458 = scalar_select %p457, %s456, 63
        %s459 = smul.addr %s458, 2
        %s460 = smul.addr %s459, 8
        %s461 = scalar_lea.vmem %s0, %s460
        %p462 = pneg %p52
        %p463 = pneg %p49
        %p464 = pneg %p73
        %p465 = pneg %p70
        %p466 = pneg %p94
        %p467 = pneg %p91
        %p468 = pneg %p115
        %p469 = pneg %p112
        %p470 = pneg %p136
        %p471 = pneg %p133
        %p472 = pneg %p157
        %p473 = pneg %p154
        %p474 = pneg %p178
        %p475 = pneg %p175
        %p476 = pneg %p199
        %p477 = pneg %p196
        %p478 = pneg %p220
        %p479 = pneg %p217
        %p480 = pneg %p241
        %p481 = pneg %p238
        %p482 = pneg %p262
        %p483 = pneg %p259
        %p484 = pneg %p283
        %p485 = pneg %p280
        %p486 = pneg %p304
        %p487 = pneg %p301
        %p488 = pneg %p330
        %p489 = pneg %p327
        %s490 = sand.u32 %s317, 1
        %s491 = scalar_lea.sflag [#allocation4], %s490
        %s492 = sand.u32 %s317, 1
        %s493 = smul.addr %s492, 512
        %s494 = scalar_lea.vmem [#allocation7], %s493
        %p495 = pneg %p356
        %p496 = pneg %p353
        %s497 = smul.u32 32, %s31
        %p498 = scmp.lt.s32.totalorder %s497, 63
        %s499 = scalar_select %p498, %s497, 63
        %s500 = smul.addr %s499, 8
        %s501 = scalar_lea.vmem %s14, %s500
        %s502 = smul.u32 32, %s31
        %p503 = scmp.lt.s32.totalorder %s502, 63
        %s504 = scalar_select %p503, %s502, 63
        %s505 = smul.addr %s504, 2
        %s506 = smul.addr %s505, 8
        %s507 = scalar_lea.vmem %s0, %s506
        %s508 = smul.u32 32, %s31
        %s509 = smul.u32 32, %s31
        %s510 = smul.u32 32, %s31
        %p511 = scmp.lt.s32.totalorder %s510, 63
        %s512 = scalar_select %p511, %s510, 63
        %s513 = smul.addr %s512, 8
        %s514 = scalar_lea.vmem %s14, %s513
        %s515 = smul.u32 32, %s31
        %v516 = vld [vmem:[%s507] sm:$0xff]
        %v517 = vld [vmem:[%s507 + $0x8] sm:$0xff]
        %v518 = vld [vmem:[%s507 + $0x10] sm:$0xff]
        %v519 = vld [vmem:[%s507 + $0x18] sm:$0xff]
        %v520 = vld [vmem:[%s507 + $0x20] sm:$0xff]
        %v521 = vld [vmem:[%s507 + $0x28] sm:$0xff]
        %v522 = vld [vmem:[%s507 + $0x30] sm:$0xff]
        %v523 = vld [vmem:[%s507 + $0x38] sm:$0xff]
        %v524 = vld [vmem:[%s507 + $0x40] sm:$0xff]
        %v525 = vld [vmem:[%s507 + $0x48] sm:$0xff]
        %v526 = vld [vmem:[%s507 + $0x50] sm:$0xff]
        %v527 = vld [vmem:[%s507 + $0x58] sm:$0xff]
        %v528 = vld [vmem:[%s507 + $0x60] sm:$0xff]
        %v529 = vld [vmem:[%s507 + $0x68] sm:$0xff]
        %v530 = vld [vmem:[%s507 + $0x70] sm:$0xff]
        %v531 = vld [vmem:[%s507 + $0x78] sm:$0xff]
        %v532 = vld [vmem:[%s507 + $0x80] sm:$0xff]
        %v533 = vld [vmem:[%s507 + $0x88] sm:$0xff]
        %v534 = vld [vmem:[%s507 + $0x90] sm:$0xff]
        %v535 = vld [vmem:[%s507 + $0x98] sm:$0xff]
        %v536 = vld [vmem:[%s507 + $0xa0] sm:$0xff]
        %v537 = vld [vmem:[%s507 + $0xa8] sm:$0xff]
        %v538 = vld [vmem:[%s507 + $0xb0] sm:$0xff]
        %v539 = vld [vmem:[%s507 + $0xb8] sm:$0xff]
        %v540 = vld [vmem:[%s507 + $0xc0] sm:$0xff]
        %v541 = vld [vmem:[%s507 + $0xc8] sm:$0xff]
        %v542 = vld [vmem:[%s507 + $0xd0] sm:$0xff]
        %v543 = vld [vmem:[%s507 + $0xd8] sm:$0xff]
        %v544 = vld [vmem:[%s507 + $0xe0] sm:$0xff]
        %v545 = vld [vmem:[%s507 + $0xe8] sm:$0xff]
        %v546 = vld [vmem:[%s507 + $0xf0] sm:$0xff]
        %v547 = vld [vmem:[%s507 + $0xf8] sm:$0xff]
        %v548 = vld [vmem:[%s507 + $0x100] sm:$0xff]
        %v549 = vld [vmem:[%s507 + $0x108] sm:$0xff]
        %v550 = vld [vmem:[%s507 + $0x110] sm:$0xff]
        %v551 = vld [vmem:[%s507 + $0x118] sm:$0xff]
        %v552 = vld [vmem:[%s507 + $0x120] sm:$0xff]
        %v553 = vld [vmem:[%s507 + $0x128] sm:$0xff]
        %v554 = vld [vmem:[%s507 + $0x130] sm:$0xff]
        %v555 = vld [vmem:[%s507 + $0x138] sm:$0xff]
        %v556 = vld [vmem:[%s507 + $0x140] sm:$0xff]
        %v557 = vld [vmem:[%s507 + $0x148] sm:$0xff]
        %v558 = vld [vmem:[%s507 + $0x150] sm:$0xff]
        %v559 = vld [vmem:[%s507 + $0x158] sm:$0xff]
        %v560 = vld [vmem:[%s507 + $0x160] sm:$0xff]
        %v561 = vld [vmem:[%s507 + $0x168] sm:$0xff]
        %v562 = vld [vmem:[%s507 + $0x170] sm:$0xff]
        %v563 = vld [vmem:[%s507 + $0x178] sm:$0xff]
        %v564 = vld [vmem:[%s507 + $0x180] sm:$0xff]
        %v565 = vld [vmem:[%s507 + $0x188] sm:$0xff]
        %v566 = vld [vmem:[%s507 + $0x190] sm:$0xff]
        %v567 = vld [vmem:[%s507 + $0x198] sm:$0xff]
        %v568 = vld [vmem:[%s507 + $0x1a0] sm:$0xff]
        %v569 = vld [vmem:[%s507 + $0x1a8] sm:$0xff]
        %v570 = vld [vmem:[%s507 + $0x1b0] sm:$0xff]
        %v571 = vld [vmem:[%s507 + $0x1b8] sm:$0xff]
        %v572 = vld [vmem:[%s507 + $0x1c0] sm:$0xff]
        %v573 = vld [vmem:[%s507 + $0x1c8] sm:$0xff]
        %v574 = vld [vmem:[%s507 + $0x1d0] sm:$0xff]
        %v575 = vld [vmem:[%s507 + $0x1d8] sm:$0xff]
        %v576 = vld [vmem:[%s507 + $0x1e0] sm:$0xff]
        %v577 = vld [vmem:[%s507 + $0x1e8] sm:$0xff]
        %v578 = vld [vmem:[%s507 + $0x1f0] sm:$0xff]
        %v579 = vld [vmem:[%s507 + $0x1f8] sm:$0xff]
        %v580 = vld [vmem:[%s1] sm:$0xff]
        %v581 = vld [vmem:[%s1 + $0x8] sm:$0xff]
        %v582 = vld [vmem:[%s1 + $0x10] sm:$0xff]
        %v583 = vld [vmem:[%s1 + $0x18] sm:$0xff]
        %v584 = vld [vmem:[%s1 + $0x20] sm:$0xff]
        %v585 = vld [vmem:[%s1 + $0x28] sm:$0xff]
        %v586 = vld [vmem:[%s1 + $0x30] sm:$0xff]
        %v587 = vld [vmem:[%s1 + $0x38] sm:$0xff]
        %v588 = vld [vmem:[%s1 + $0x40] sm:$0xff]
        %v589 = vld [vmem:[%s1 + $0x48] sm:$0xff]
        %v590 = vld [vmem:[%s1 + $0x50] sm:$0xff]
        %v591 = vld [vmem:[%s1 + $0x58] sm:$0xff]
        %v592 = vld [vmem:[%s1 + $0x60] sm:$0xff]
        %v593 = vld [vmem:[%s1 + $0x68] sm:$0xff]
        %v594 = vld [vmem:[%s1 + $0x70] sm:$0xff]
        %v595 = vld [vmem:[%s1 + $0x78] sm:$0xff]
        %v596 = vld [vmem:[%s1 + $0x80] sm:$0xff]
        %v597 = vld [vmem:[%s1 + $0x88] sm:$0xff]
        %v598 = vld [vmem:[%s1 + $0x90] sm:$0xff]
        %v599 = vld [vmem:[%s1 + $0x98] sm:$0xff]
        %v600 = vld [vmem:[%s1 + $0xa0] sm:$0xff]
        %v601 = vld [vmem:[%s1 + $0xa8] sm:$0xff]
        %v602 = vld [vmem:[%s1 + $0xb0] sm:$0xff]
        %v603 = vld [vmem:[%s1 + $0xb8] sm:$0xff]
        %v604 = vld [vmem:[%s1 + $0xc0] sm:$0xff]
        %v605 = vld [vmem:[%s1 + $0xc8] sm:$0xff]
        %v606 = vld [vmem:[%s1 + $0xd0] sm:$0xff]
        %v607 = vld [vmem:[%s1 + $0xd8] sm:$0xff]
        %v608 = vld [vmem:[%s1 + $0xe0] sm:$0xff]
        %v609 = vld [vmem:[%s1 + $0xe8] sm:$0xff]
        %v610 = vld [vmem:[%s1 + $0xf0] sm:$0xff]
        %v611 = vld [vmem:[%s1 + $0xf8] sm:$0xff]
        %v612 = vld [vmem:[%s1 + $0x100] sm:$0xff]
        %v613 = vld [vmem:[%s1 + $0x108] sm:$0xff]
        %v614 = vld [vmem:[%s1 + $0x110] sm:$0xff]
        %v615 = vld [vmem:[%s1 + $0x118] sm:$0xff]
        %v616 = vld [vmem:[%s1 + $0x120] sm:$0xff]
        %v617 = vld [vmem:[%s1 + $0x128] sm:$0xff]
        %v618 = vld [vmem:[%s1 + $0x130] sm:$0xff]
        %v619 = vld [vmem:[%s1 + $0x138] sm:$0xff]
        %v620 = vld [vmem:[%s1 + $0x140] sm:$0xff]
        %v621 = vld [vmem:[%s1 + $0x148] sm:$0xff]
        %v622 = vld [vmem:[%s1 + $0x150] sm:$0xff]
        %v623 = vld [vmem:[%s1 + $0x158] sm:$0xff]
        %v624 = vld [vmem:[%s1 + $0x160] sm:$0xff]
        %v625 = vld [vmem:[%s1 + $0x168] sm:$0xff]
        %v626 = vld [vmem:[%s1 + $0x170] sm:$0xff]
        %v627 = vld [vmem:[%s1 + $0x178] sm:$0xff]
        %v628 = vld [vmem:[%s1 + $0x180] sm:$0xff]
        %v629 = vld [vmem:[%s1 + $0x188] sm:$0xff]
        %v630 = vld [vmem:[%s1 + $0x190] sm:$0xff]
        %v631 = vld [vmem:[%s1 + $0x198] sm:$0xff]
        %v632 = vld [vmem:[%s1 + $0x1a0] sm:$0xff]
        %v633 = vld [vmem:[%s1 + $0x1a8] sm:$0xff]
        %v634 = vld [vmem:[%s1 + $0x1b0] sm:$0xff]
        %v635 = vld [vmem:[%s1 + $0x1b8] sm:$0xff]
        %v636 = vld [vmem:[%s1 + $0x1c0] sm:$0xff]
        %v637 = vld [vmem:[%s1 + $0x1c8] sm:$0xff]
        %v638 = vld [vmem:[%s1 + $0x1d0] sm:$0xff]
        %v639 = vld [vmem:[%s1 + $0x1d8] sm:$0xff]
        %v640 = vld [vmem:[%s1 + $0x1e0] sm:$0xff]
        %v641 = vld [vmem:[%s1 + $0x1e8] sm:$0xff]
        %v642 = vld [vmem:[%s1 + $0x1f0] sm:$0xff]
        %v643 = vld [vmem:[%s1 + $0x1f8] sm:$0xff]
        %v644 = vld [vmem:[%s2] sm:$0x3]
        %v646 = vlaneseq
        %v647 = vshrl.u32 %v646, 7
        %v648 = vsub.s32 0, %v647
        %v649 = vrot.slane %v644, %v648
        %v650 = vlaneseq
        %v651 = vshrl.u32 %v650, 7
        %v652 = vsub.s32 1, %v651
        %v653 = vrot.slane %v644, %v652
        %656 = vmatprep.subr.mxu0 %v611
        %657 = vmatpush1.msra.mxu0 %v610
        %658 = vmatprep.subr.mxu0 %v609
        %659 = vmatpush1.msra.mxu0 %v608
        %660 = vmatprep.subr.mxu0 %v607
        %661 = vmatpush1.msra.mxu0 %v606
        %662 = vmatprep.subr.mxu0 %v605
        %663 = vmatpush1.msra.mxu0 %v604
        %664 = vmatprep.subr.mxu0 %v603
        %665 = vmatpush1.msra.mxu0 %v602
        %666 = vmatprep.subr.mxu0 %v601
        %667 = vmatpush1.msra.mxu0 %v600
        %668 = vmatprep.subr.mxu0 %v599
        %669 = vmatpush1.msra.mxu0 %v598
        %670 = vmatprep.subr.mxu0 %v597
        %671 = vmatpush1.msra.mxu0 %v596
        %672 = vmatprep.subr.mxu0 %v595
        %673 = vmatpush1.msra.mxu0 %v594
        %674 = vmatprep.subr.mxu0 %v593
        %675 = vmatpush1.msra.mxu0 %v592
        %676 = vmatprep.subr.mxu0 %v591
        %677 = vmatpush1.msra.mxu0 %v590
        %678 = vmatprep.subr.mxu0 %v589
        %679 = vmatpush1.msra.mxu0 %v588
        %680 = vmatprep.subr.mxu0 %v587
        %681 = vmatpush1.msra.mxu0 %v586
        %682 = vmatprep.subr.mxu0 %v585
        %683 = vmatpush1.msra.mxu0 %v584
        %684 = vmatprep.subr.mxu0 %v583
        %685 = vmatpush1.msra.mxu0 %v582
        %686 = vmatprep.subr.mxu0 %v581
        %687 = vmatpush1.msra.mxu0 %v580
        %688 = vmatprep.subr.mxu0 %v643
        %689 = vmatpush2.msra.mxu0 %v642
        %690 = vmatprep.subr.mxu0 %v641
        %691 = vmatpush2.msra.mxu0 %v640
        %692 = vmatprep.subr.mxu0 %v639
        %693 = vmatpush2.msra.mxu0 %v638
        %694 = vmatprep.subr.mxu0 %v637
        %695 = vmatpush2.msra.mxu0 %v636
        %696 = vmatprep.subr.mxu0 %v635
        %697 = vmatpush2.msra.mxu0 %v634
        %698 = vmatprep.subr.mxu0 %v633
        %699 = vmatpush2.msra.mxu0 %v632
        %700 = vmatprep.subr.mxu0 %v631
        %701 = vmatpush2.msra.mxu0 %v630
        %702 = vmatprep.subr.mxu0 %v629
        %703 = vmatpush2.msra.mxu0 %v628
        %704 = vmatprep.subr.mxu0 %v627
        %705 = vmatpush2.msra.mxu0 %v626
        %706 = vmatprep.subr.mxu0 %v625
        %707 = vmatpush2.msra.mxu0 %v624
        %708 = vmatprep.subr.mxu0 %v623
        %709 = vmatpush2.msra.mxu0 %v622
        %710 = vmatprep.subr.mxu0 %v621
        %711 = vmatpush2.msra.mxu0 %v620
        %712 = vmatprep.subr.mxu0 %v619
        %713 = vmatpush2.msra.mxu0 %v618
        %714 = vmatprep.subr.mxu0 %v617
        %715 = vmatpush2.msra.mxu0 %v616
        %716 = vmatprep.subr.mxu0 %v615
        %717 = vmatpush2.msra.mxu0 %v614
        %718 = vmatprep.subr.mxu0 %v613
        %719 = vmatpush2.msra.mxu0 %v612
        %720 = vmatprep.mubr.f32.mxu0 %v517
        %721 = vmatmul.mubr.f32.gmra.mxu0 %v516
        %v722 = vpop.f32.mrf.mxu0
        %v723 = vadd.f32 %v649, %v722
        %v724 = vpop.f32.mrf.mxu0
        %v725 = vadd.f32 %v653, %v724
        %726 = vmatprep.mubr.f32.mxu0 %v519
        %727 = vmatmul.mubr.f32.gmra.mxu0 %v518
        %v728 = vpop.f32.mrf.mxu0
        %v729 = vadd.f32 %v649, %v728
        %v730 = vpop.f32.mrf.mxu0
        %v731 = vadd.f32 %v653, %v730
        %732 = vmatprep.mubr.f32.mxu0 %v521
        %733 = vmatmul.mubr.f32.gmra.mxu0 %v520
        %v734 = vpop.f32.mrf.mxu0
        %v735 = vadd.f32 %v649, %v734
        %v736 = vpop.f32.mrf.mxu0
        %v737 = vadd.f32 %v653, %v736
        %738 = vmatprep.mubr.f32.mxu0 %v523
        %739 = vmatmul.mubr.f32.gmra.mxu0 %v522
        %v740 = vpop.f32.mrf.mxu0
        %v741 = vadd.f32 %v649, %v740
        %v742 = vpop.f32.mrf.mxu0
        %v743 = vadd.f32 %v653, %v742
        %744 = vmatprep.mubr.f32.mxu0 %v525
        %745 = vmatmul.mubr.f32.gmra.mxu0 %v524
        %v746 = vpop.f32.mrf.mxu0
        %v747 = vadd.f32 %v649, %v746
        %v748 = vpop.f32.mrf.mxu0
        %v749 = vadd.f32 %v653, %v748
        %750 = vmatprep.mubr.f32.mxu0 %v527
        %751 = vmatmul.mubr.f32.gmra.mxu0 %v526
        %v752 = vpop.f32.mrf.mxu0
        %v753 = vadd.f32 %v649, %v752
        %v754 = vpop.f32.mrf.mxu0
        %v755 = vadd.f32 %v653, %v754
        %756 = vmatprep.mubr.f32.mxu0 %v529
        %757 = vmatmul.mubr.f32.gmra.mxu0 %v528
        %v758 = vpop.f32.mrf.mxu0
        %v759 = vadd.f32 %v649, %v758
        %v760 = vpop.f32.mrf.mxu0
        %v761 = vadd.f32 %v653, %v760
        %762 = vmatprep.mubr.f32.mxu0 %v531
        %763 = vmatmul.mubr.f32.gmra.mxu0 %v530
        %v764 = vpop.f32.mrf.mxu0
        %v765 = vadd.f32 %v649, %v764
        %v766 = vpop.f32.mrf.mxu0
        %v767 = vadd.f32 %v653, %v766
        %768 = vmatprep.mubr.f32.mxu0 %v533
        %769 = vmatmul.mubr.f32.gmra.mxu0 %v532
        %v770 = vpop.f32.mrf.mxu0
        %v771 = vadd.f32 %v649, %v770
        %v772 = vpop.f32.mrf.mxu0
        %v773 = vadd.f32 %v653, %v772
        %774 = vmatprep.mubr.f32.mxu0 %v535
        %775 = vmatmul.mubr.f32.gmra.mxu0 %v534
        %v776 = vpop.f32.mrf.mxu0
        %v777 = vadd.f32 %v649, %v776
        %v778 = vpop.f32.mrf.mxu0
        %v779 = vadd.f32 %v653, %v778
        %780 = vmatprep.mubr.f32.mxu0 %v537
        %781 = vmatmul.mubr.f32.gmra.mxu0 %v536
        %v782 = vpop.f32.mrf.mxu0
        %v783 = vadd.f32 %v649, %v782
        %v784 = vpop.f32.mrf.mxu0
        %v785 = vadd.f32 %v653, %v784
        %786 = vmatprep.mubr.f32.mxu0 %v539
        %787 = vmatmul.mubr.f32.gmra.mxu0 %v538
        %v788 = vpop.f32.mrf.mxu0
        %v789 = vadd.f32 %v649, %v788
        %v790 = vpop.f32.mrf.mxu0
        %v791 = vadd.f32 %v653, %v790
        %792 = vmatprep.mubr.f32.mxu0 %v541
        %793 = vmatmul.mubr.f32.gmra.mxu0 %v540
        %v794 = vpop.f32.mrf.mxu0
        %v795 = vadd.f32 %v649, %v794
        %v796 = vpop.f32.mrf.mxu0
        %v797 = vadd.f32 %v653, %v796
        %798 = vmatprep.mubr.f32.mxu0 %v543
        %799 = vmatmul.mubr.f32.gmra.mxu0 %v542
        %v800 = vpop.f32.mrf.mxu0
        %v801 = vadd.f32 %v649, %v800
        %v802 = vpop.f32.mrf.mxu0
        %v803 = vadd.f32 %v653, %v802
        %804 = vmatprep.mubr.f32.mxu0 %v545
        %805 = vmatmul.mubr.f32.gmra.mxu0 %v544
        %v806 = vpop.f32.mrf.mxu0
        %v807 = vadd.f32 %v649, %v806
        %v808 = vpop.f32.mrf.mxu0
        %v809 = vadd.f32 %v653, %v808
        %810 = vmatprep.mubr.f32.mxu0 %v547
        %811 = vmatmul.mubr.f32.gmra.mxu0 %v546
        %v812 = vpop.f32.mrf.mxu0
        %v813 = vadd.f32 %v649, %v812
        %v814 = vpop.f32.mrf.mxu0
        %v815 = vadd.f32 %v653, %v814
        %816 = vmatprep.mubr.f32.mxu0 %v549
        %817 = vmatmul.mubr.f32.gmra.mxu0 %v548
        %v818 = vpop.f32.mrf.mxu0
        %v819 = vadd.f32 %v649, %v818
        %v820 = vpop.f32.mrf.mxu0
        %v821 = vadd.f32 %v653, %v820
        %822 = vmatprep.mubr.f32.mxu0 %v551
        %823 = vmatmul.mubr.f32.gmra.mxu0 %v550
        %v824 = vpop.f32.mrf.mxu0
        %v825 = vadd.f32 %v649, %v824
        %v826 = vpop.f32.mrf.mxu0
        %v827 = vadd.f32 %v653, %v826
        %828 = vmatprep.mubr.f32.mxu0 %v553
        %829 = vmatmul.mubr.f32.gmra.mxu0 %v552
        %v830 = vpop.f32.mrf.mxu0
        %v831 = vadd.f32 %v649, %v830
        %v832 = vpop.f32.mrf.mxu0
        %v833 = vadd.f32 %v653, %v832
        %834 = vmatprep.mubr.f32.mxu0 %v555
        %835 = vmatmul.mubr.f32.gmra.mxu0 %v554
        %v836 = vpop.f32.mrf.mxu0
        %v837 = vadd.f32 %v649, %v836
        %v838 = vpop.f32.mrf.mxu0
        %v839 = vadd.f32 %v653, %v838
        %840 = vmatprep.mubr.f32.mxu0 %v557
        %841 = vmatmul.mubr.f32.gmra.mxu0 %v556
        %v842 = vpop.f32.mrf.mxu0
        %v843 = vadd.f32 %v649, %v842
        %v844 = vpop.f32.mrf.mxu0
        %v845 = vadd.f32 %v653, %v844
        %846 = vmatprep.mubr.f32.mxu0 %v559
        %847 = vmatmul.mubr.f32.gmra.mxu0 %v558
        %v848 = vpop.f32.mrf.mxu0
        %v849 = vadd.f32 %v649, %v848
        %v850 = vpop.f32.mrf.mxu0
        %v851 = vadd.f32 %v653, %v850
        %852 = vmatprep.mubr.f32.mxu0 %v561
        %853 = vmatmul.mubr.f32.gmra.mxu0 %v560
        %v854 = vpop.f32.mrf.mxu0
        %v855 = vadd.f32 %v649, %v854
        %v856 = vpop.f32.mrf.mxu0
        %v857 = vadd.f32 %v653, %v856
        %858 = vmatprep.mubr.f32.mxu0 %v563
        %859 = vmatmul.mubr.f32.gmra.mxu0 %v562
        %v860 = vpop.f32.mrf.mxu0
        %v861 = vadd.f32 %v649, %v860
        %v862 = vpop.f32.mrf.mxu0
        %v863 = vadd.f32 %v653, %v862
        %864 = vmatprep.mubr.f32.mxu0 %v565
        %865 = vmatmul.mubr.f32.gmra.mxu0 %v564
        %v866 = vpop.f32.mrf.mxu0
        %v867 = vadd.f32 %v649, %v866
        %v868 = vpop.f32.mrf.mxu0
        %v869 = vadd.f32 %v653, %v868
        %870 = vmatprep.mubr.f32.mxu0 %v567
        %871 = vmatmul.mubr.f32.gmra.mxu0 %v566
        %v872 = vpop.f32.mrf.mxu0
        %v873 = vadd.f32 %v649, %v872
        %v874 = vpop.f32.mrf.mxu0
        %v875 = vadd.f32 %v653, %v874
        %876 = vmatprep.mubr.f32.mxu0 %v569
        %877 = vmatmul.mubr.f32.gmra.mxu0 %v568
        %v878 = vpop.f32.mrf.mxu0
        %v879 = vadd.f32 %v649, %v878
        %v880 = vpop.f32.mrf.mxu0
        %v881 = vadd.f32 %v653, %v880
        %882 = vmatprep.mubr.f32.mxu0 %v571
        %883 = vmatmul.mubr.f32.gmra.mxu0 %v570
        %v884 = vpop.f32.mrf.mxu0
        %v885 = vadd.f32 %v649, %v884
        %v886 = vpop.f32.mrf.mxu0
        %v887 = vadd.f32 %v653, %v886
        %888 = vmatprep.mubr.f32.mxu0 %v573
        %889 = vmatmul.mubr.f32.gmra.mxu0 %v572
        %v890 = vpop.f32.mrf.mxu0
        %v891 = vadd.f32 %v649, %v890
        %v892 = vpop.f32.mrf.mxu0
        %v893 = vadd.f32 %v653, %v892
        %894 = vmatprep.mubr.f32.mxu0 %v575
        %895 = vmatmul.mubr.f32.gmra.mxu0 %v574
        %v896 = vpop.f32.mrf.mxu0
        %v897 = vadd.f32 %v649, %v896
        %v898 = vpop.f32.mrf.mxu0
        %v899 = vadd.f32 %v653, %v898
        %900 = vmatprep.mubr.f32.mxu0 %v577
        %901 = vmatmul.mubr.f32.gmra.mxu0 %v576
        %v902 = vpop.f32.mrf.mxu0
        %v903 = vadd.f32 %v649, %v902
        %v904 = vpop.f32.mrf.mxu0
        %v905 = vadd.f32 %v653, %v904
        %906 = vmatprep.mubr.f32.mxu0 %v579
        %907 = vmatmul.mubr.f32.gmra.mxu0 %v578
        %v908 = vpop.f32.mrf.mxu0
        %v909 = vadd.f32 %v649, %v908
        %v910 = vpop.f32.mrf.mxu0
        %v911 = vadd.f32 %v653, %v910
        %912 = vdwg.mxu0
        %v913 = vmax.f32 %v723, 0.0
        %v914 = vmax.f32 %v725, 0.0
        %v915 = vmax.f32 %v729, 0.0
        %v916 = vmax.f32 %v731, 0.0
        %v917 = vmax.f32 %v735, 0.0
        %v918 = vmax.f32 %v737, 0.0
        %v919 = vmax.f32 %v741, 0.0
        %v920 = vmax.f32 %v743, 0.0
        %v921 = vmax.f32 %v747, 0.0
        %v922 = vmax.f32 %v749, 0.0
        %v923 = vmax.f32 %v753, 0.0
        %v924 = vmax.f32 %v755, 0.0
        %v925 = vmax.f32 %v759, 0.0
        %v926 = vmax.f32 %v761, 0.0
        %v927 = vmax.f32 %v765, 0.0
        %v928 = vmax.f32 %v767, 0.0
        %v929 = vmax.f32 %v771, 0.0
        %v930 = vmax.f32 %v773, 0.0
        %v931 = vmax.f32 %v777, 0.0
        %v932 = vmax.f32 %v779, 0.0
        %v933 = vmax.f32 %v783, 0.0
        %v934 = vmax.f32 %v785, 0.0
        %v935 = vmax.f32 %v789, 0.0
        %v936 = vmax.f32 %v791, 0.0
        %v937 = vmax.f32 %v795, 0.0
        %v938 = vmax.f32 %v797, 0.0
        %v939 = vmax.f32 %v801, 0.0
        %v940 = vmax.f32 %v803, 0.0
        %v941 = vmax.f32 %v807, 0.0
        %v942 = vmax.f32 %v809, 0.0
        %v943 = vmax.f32 %v813, 0.0
        %v944 = vmax.f32 %v815, 0.0
        %v945 = vmax.f32 %v819, 0.0
        %v946 = vmax.f32 %v821, 0.0
        %v947 = vmax.f32 %v825, 0.0
        %v948 = vmax.f32 %v827, 0.0
        %v949 = vmax.f32 %v831, 0.0
        %v950 = vmax.f32 %v833, 0.0
        %v951 = vmax.f32 %v837, 0.0
        %v952 = vmax.f32 %v839, 0.0
        %v953 = vmax.f32 %v843, 0.0
        %v954 = vmax.f32 %v845, 0.0
        %v955 = vmax.f32 %v849, 0.0
        %v956 = vmax.f32 %v851, 0.0
        %v957 = vmax.f32 %v855, 0.0
        %v958 = vmax.f32 %v857, 0.0
        %v959 = vmax.f32 %v861, 0.0
        %v960 = vmax.f32 %v863, 0.0
        %v961 = vmax.f32 %v867, 0.0
        %v962 = vmax.f32 %v869, 0.0
        %v963 = vmax.f32 %v873, 0.0
        %v964 = vmax.f32 %v875, 0.0
        %v965 = vmax.f32 %v879, 0.0
        %v966 = vmax.f32 %v881, 0.0
        %v967 = vmax.f32 %v885, 0.0
        %v968 = vmax.f32 %v887, 0.0
        %v969 = vmax.f32 %v891, 0.0
        %v970 = vmax.f32 %v893, 0.0
        %v971 = vmax.f32 %v897, 0.0
        %v972 = vmax.f32 %v899, 0.0
        %v973 = vmax.f32 %v903, 0.0
        %v974 = vmax.f32 %v905, 0.0
        %v975 = vmax.f32 %v909, 0.0
        %v976 = vmax.f32 %v911, 0.0
        %v977 = vld [vmem:[%s3] sm:$0xff]
        %v978 = vld [vmem:[%s3 + $0x8] sm:$0xff]
        %v979 = vld [vmem:[%s3 + $0x10] sm:$0xff]
        %v980 = vld [vmem:[%s3 + $0x18] sm:$0xff]
        %v981 = vld [vmem:[%s3 + $0x20] sm:$0xff]
        %v982 = vld [vmem:[%s3 + $0x28] sm:$0xff]
        %v983 = vld [vmem:[%s3 + $0x30] sm:$0xff]
        %v984 = vld [vmem:[%s3 + $0x38] sm:$0xff]
        %v985 = vld [vmem:[%s3 + $0x40] sm:$0xff]
        %v986 = vld [vmem:[%s3 + $0x48] sm:$0xff]
        %v987 = vld [vmem:[%s3 + $0x50] sm:$0xff]
        %v988 = vld [vmem:[%s3 + $0x58] sm:$0xff]
        %v989 = vld [vmem:[%s3 + $0x60] sm:$0xff]
        %v990 = vld [vmem:[%s3 + $0x68] sm:$0xff]
        %v991 = vld [vmem:[%s3 + $0x70] sm:$0xff]
        %v992 = vld [vmem:[%s3 + $0x78] sm:$0xff]
        %v993 = vld [vmem:[%s3 + $0x80] sm:$0xff]
        %v994 = vld [vmem:[%s3 + $0x88] sm:$0xff]
        %v995 = vld [vmem:[%s3 + $0x90] sm:$0xff]
        %v996 = vld [vmem:[%s3 + $0x98] sm:$0xff]
        %v997 = vld [vmem:[%s4] sm:$0x1]
        %v999 = vlaneseq
        %v1000 = vshrl.u32 %v999, 7
        %v1001 = vsub.s32 0, %v1000
        %v1002 = vrot.slane %v997, %v1001
        %vm1004 = vcmask 261120
        %v1006 = vsel %vm1004, %v914, 0
        %v1009 = vsel %vm1004, %v916, 0
        %v1012 = vsel %vm1004, %v918, 0
        %v1015 = vsel %vm1004, %v920, 0
        %v1018 = vsel %vm1004, %v922, 0
        %v1021 = vsel %vm1004, %v924, 0
        %v1024 = vsel %vm1004, %v926, 0
        %v1027 = vsel %vm1004, %v928, 0
        %v1030 = vsel %vm1004, %v930, 0
        %v1033 = vsel %vm1004, %v932, 0
        %v1036 = vsel %vm1004, %v934, 0
        %v1039 = vsel %vm1004, %v936, 0
        %v1042 = vsel %vm1004, %v938, 0
        %v1045 = vsel %vm1004, %v940, 0
        %v1048 = vsel %vm1004, %v942, 0
        %v1051 = vsel %vm1004, %v944, 0
        %v1054 = vsel %vm1004, %v946, 0
        %v1057 = vsel %vm1004, %v948, 0
        %v1060 = vsel %vm1004, %v950, 0
        %v1063 = vsel %vm1004, %v952, 0
        %v1066 = vsel %vm1004, %v954, 0
        %v1069 = vsel %vm1004, %v956, 0
        %v1072 = vsel %vm1004, %v958, 0
        %v1075 = vsel %vm1004, %v960, 0
        %v1078 = vsel %vm1004, %v962, 0
        %v1081 = vsel %vm1004, %v964, 0
        %v1084 = vsel %vm1004, %v966, 0
        %v1087 = vsel %vm1004, %v968, 0
        %v1090 = vsel %vm1004, %v970, 0
        %v1093 = vsel %vm1004, %v972, 0
        %v1096 = vsel %vm1004, %v974, 0
        %v1099 = vsel %vm1004, %v976, 0
        %1101 = vmatprep.subr.mxu0 0.0
        %1102 = vmatpush1.msra.mxu0 %v992
        %1103 = vmatprep.subr.mxu0 0.0
        %1104 = vmatpush1.msra.mxu0 %v991
        %1105 = vmatprep.subr.mxu0 0.0
        %1106 = vmatpush1.msra.mxu0 %v990
        %1107 = vmatprep.subr.mxu0 0.0
        %1108 = vmatpush1.msra.mxu0 %v989
        %1109 = vmatprep.subr.mxu0 0.0
        %1110 = vmatpush1.msra.mxu0 %v988
        %1111 = vmatprep.subr.mxu0 0.0
        %1112 = vmatpush1.msra.mxu0 %v987
        %1113 = vmatprep.subr.mxu0 0.0
        %1114 = vmatpush1.msra.mxu0 %v986
        %1115 = vmatprep.subr.mxu0 0.0
        %1116 = vmatpush1.msra.mxu0 %v985
        %1117 = vmatprep.subr.mxu0 0.0
        %1118 = vmatpush1.msra.mxu0 %v984
        %1119 = vmatprep.subr.mxu0 0.0
        %1120 = vmatpush1.msra.mxu0 %v983
        %1121 = vmatprep.subr.mxu0 0.0
        %1122 = vmatpush1.msra.mxu0 %v982
        %1123 = vmatprep.subr.mxu0 0.0
        %1124 = vmatpush1.msra.mxu0 %v981
        %1125 = vmatprep.subr.mxu0 0.0
        %1126 = vmatpush1.msra.mxu0 %v980
        %1127 = vmatprep.subr.mxu0 0.0
        %1128 = vmatpush1.msra.mxu0 %v979
        %1129 = vmatprep.subr.mxu0 0.0
        %1130 = vmatpush1.msra.mxu0 %v978
        %1131 = vmatprep.subr.mxu0 0.0
        %1132 = vmatpush1.msra.mxu0 %v977
        %1133 = vmatprep.subr.mxu0 0.0
        %1134 = vmatpush2.msra.mxu0 0.0
        %1135 = vmatprep.subr.mxu0 0.0
        %1136 = vmatpush2.msra.mxu0 0.0
        %1137 = vmatprep.subr.mxu0 0.0
        %1138 = vmatpush2.msra.mxu0 0.0
        %1139 = vmatprep.subr.mxu0 0.0
        %1140 = vmatpush2.msra.mxu0 0.0
        %1141 = vmatprep.subr.mxu0 0.0
        %1142 = vmatpush2.msra.mxu0 0.0
        %1143 = vmatprep.subr.mxu0 0.0
        %1144 = vmatpush2.msra.mxu0 0.0
        %1145 = vmatprep.subr.mxu0 0.0
        %1146 = vmatpush2.msra.mxu0 0.0
        %1147 = vmatprep.subr.mxu0 0.0
        %1148 = vmatpush2.msra.mxu0 0.0
        %1149 = vmatprep.subr.mxu0 0.0
        %1150 = vmatpush2.msra.mxu0 0.0
        %1151 = vmatprep.subr.mxu0 0.0
        %1152 = vmatpush2.msra.mxu0 0.0
        %1153 = vmatprep.subr.mxu0 0.0
        %1154 = vmatpush2.msra.mxu0 0.0
        %1155 = vmatprep.subr.mxu0 0.0
        %1156 = vmatpush2.msra.mxu0 0.0
        %1157 = vmatprep.subr.mxu0 0.0
        %1158 = vmatpush2.msra.mxu0 %v996
        %1159 = vmatprep.subr.mxu0 0.0
        %1160 = vmatpush2.msra.mxu0 %v995
        %1161 = vmatprep.subr.mxu0 0.0
        %1162 = vmatpush2.msra.mxu0 %v994
        %1163 = vmatprep.subr.mxu0 0.0
        %1164 = vmatpush2.msra.mxu0 %v993
        %1165 = vmatprep.mubr.f32.mxu0 %v1006
        %1166 = vmatmul.mubr.f32.gmra.mxu0 %v913
        %v1167 = vpop.f32.mrf.mxu0
        %v1168 = vadd.f32 %v1002, %v1167
        %v1169 = vpop.f32.mrf.mxu0
        %1170 = vmatprep.mubr.f32.mxu0 %v1009
        %1171 = vmatmul.mubr.f32.gmra.mxu0 %v915
        %v1172 = vpop.f32.mrf.mxu0
        %v1173 = vadd.f32 %v1002, %v1172
        %v1174 = vpop.f32.mrf.mxu0
        %1175 = vmatprep.mubr.f32.mxu0 %v1012
        %1176 = vmatmul.mubr.f32.gmra.mxu0 %v917
        %v1177 = vpop.f32.mrf.mxu0
        %v1178 = vadd.f32 %v1002, %v1177
        %v1179 = vpop.f32.mrf.mxu0
        %1180 = vmatprep.mubr.f32.mxu0 %v1015
        %1181 = vmatmul.mubr.f32.gmra.mxu0 %v919
        %v1182 = vpop.f32.mrf.mxu0
        %v1183 = vadd.f32 %v1002, %v1182
        %v1184 = vpop.f32.mrf.mxu0
        %1185 = vmatprep.mubr.f32.mxu0 %v1018
        %1186 = vmatmul.mubr.f32.gmra.mxu0 %v921
        %v1187 = vpop.f32.mrf.mxu0
        %v1188 = vadd.f32 %v1002, %v1187
        %v1189 = vpop.f32.mrf.mxu0
        %1190 = vmatprep.mubr.f32.mxu0 %v1021
        %1191 = vmatmul.mubr.f32.gmra.mxu0 %v923
        %v1192 = vpop.f32.mrf.mxu0
        %v1193 = vadd.f32 %v1002, %v1192
        %v1194 = vpop.f32.mrf.mxu0
        %1195 = vmatprep.mubr.f32.mxu0 %v1024
        %1196 = vmatmul.mubr.f32.gmra.mxu0 %v925
        %v1197 = vpop.f32.mrf.mxu0
        %v1198 = vadd.f32 %v1002, %v1197
        %v1199 = vpop.f32.mrf.mxu0
        %1200 = vmatprep.mubr.f32.mxu0 %v1027
        %1201 = vmatmul.mubr.f32.gmra.mxu0 %v927
        %v1202 = vpop.f32.mrf.mxu0
        %v1203 = vadd.f32 %v1002, %v1202
        %v1204 = vpop.f32.mrf.mxu0
        %1205 = vmatprep.mubr.f32.mxu0 %v1030
        %1206 = vmatmul.mubr.f32.gmra.mxu0 %v929
        %v1207 = vpop.f32.mrf.mxu0
        %v1208 = vadd.f32 %v1002, %v1207
        %v1209 = vpop.f32.mrf.mxu0
        %1210 = vmatprep.mubr.f32.mxu0 %v1033
        %1211 = vmatmul.mubr.f32.gmra.mxu0 %v931
        %v1212 = vpop.f32.mrf.mxu0
        %v1213 = vadd.f32 %v1002, %v1212
        %v1214 = vpop.f32.mrf.mxu0
        %1215 = vmatprep.mubr.f32.mxu0 %v1036
        %1216 = vmatmul.mubr.f32.gmra.mxu0 %v933
        %v1217 = vpop.f32.mrf.mxu0
        %v1218 = vadd.f32 %v1002, %v1217
        %v1219 = vpop.f32.mrf.mxu0
        %1220 = vmatprep.mubr.f32.mxu0 %v1039
        %1221 = vmatmul.mubr.f32.gmra.mxu0 %v935
        %v1222 = vpop.f32.mrf.mxu0
        %v1223 = vadd.f32 %v1002, %v1222
        %v1224 = vpop.f32.mrf.mxu0
        %1225 = vmatprep.mubr.f32.mxu0 %v1042
        %1226 = vmatmul.mubr.f32.gmra.mxu0 %v937
        %v1227 = vpop.f32.mrf.mxu0
        %v1228 = vadd.f32 %v1002, %v1227
        %v1229 = vpop.f32.mrf.mxu0
        %1230 = vmatprep.mubr.f32.mxu0 %v1045
        %1231 = vmatmul.mubr.f32.gmra.mxu0 %v939
        %v1232 = vpop.f32.mrf.mxu0
        %v1233 = vadd.f32 %v1002, %v1232
        %v1234 = vpop.f32.mrf.mxu0
        %1235 = vmatprep.mubr.f32.mxu0 %v1048
        %1236 = vmatmul.mubr.f32.gmra.mxu0 %v941
        %v1237 = vpop.f32.mrf.mxu0
        %v1238 = vadd.f32 %v1002, %v1237
        %v1239 = vpop.f32.mrf.mxu0
        %1240 = vmatprep.mubr.f32.mxu0 %v1051
        %1241 = vmatmul.mubr.f32.gmra.mxu0 %v943
        %v1242 = vpop.f32.mrf.mxu0
        %v1243 = vadd.f32 %v1002, %v1242
        %v1244 = vpop.f32.mrf.mxu0
        %1245 = vmatprep.mubr.f32.mxu0 %v1054
        %1246 = vmatmul.mubr.f32.gmra.mxu0 %v945
        %v1247 = vpop.f32.mrf.mxu0
        %v1248 = vadd.f32 %v1002, %v1247
        %v1249 = vpop.f32.mrf.mxu0
        %1250 = vmatprep.mubr.f32.mxu0 %v1057
        %1251 = vmatmul.mubr.f32.gmra.mxu0 %v947
        %v1252 = vpop.f32.mrf.mxu0
        %v1253 = vadd.f32 %v1002, %v1252
        %v1254 = vpop.f32.mrf.mxu0
        %1255 = vmatprep.mubr.f32.mxu0 %v1060
        %1256 = vmatmul.mubr.f32.gmra.mxu0 %v949
        %v1257 = vpop.f32.mrf.mxu0
        %v1258 = vadd.f32 %v1002, %v1257
        %v1259 = vpop.f32.mrf.mxu0
        %1260 = vmatprep.mubr.f32.mxu0 %v1063
        %1261 = vmatmul.mubr.f32.gmra.mxu0 %v951
        %v1262 = vpop.f32.mrf.mxu0
        %v1263 = vadd.f32 %v1002, %v1262
        %v1264 = vpop.f32.mrf.mxu0
        %1265 = vmatprep.mubr.f32.mxu0 %v1066
        %1266 = vmatmul.mubr.f32.gmra.mxu0 %v953
        %v1267 = vpop.f32.mrf.mxu0
        %v1268 = vadd.f32 %v1002, %v1267
        %v1269 = vpop.f32.mrf.mxu0
        %1270 = vmatprep.mubr.f32.mxu0 %v1069
        %1271 = vmatmul.mubr.f32.gmra.mxu0 %v955
        %v1272 = vpop.f32.mrf.mxu0
        %v1273 = vadd.f32 %v1002, %v1272
        %v1274 = vpop.f32.mrf.mxu0
        %1275 = vmatprep.mubr.f32.mxu0 %v1072
        %1276 = vmatmul.mubr.f32.gmra.mxu0 %v957
        %v1277 = vpop.f32.mrf.mxu0
        %v1278 = vadd.f32 %v1002, %v1277
        %v1279 = vpop.f32.mrf.mxu0
        %1280 = vmatprep.mubr.f32.mxu0 %v1075
        %1281 = vmatmul.mubr.f32.gmra.mxu0 %v959
        %v1282 = vpop.f32.mrf.mxu0
        %v1283 = vadd.f32 %v1002, %v1282
        %v1284 = vpop.f32.mrf.mxu0
        %1285 = vmatprep.mubr.f32.mxu0 %v1078
        %1286 = vmatmul.mubr.f32.gmra.mxu0 %v961
        %v1287 = vpop.f32.mrf.mxu0
        %v1288 = vadd.f32 %v1002, %v1287
        %v1289 = vpop.f32.mrf.mxu0
        %1290 = vmatprep.mubr.f32.mxu0 %v1081
        %1291 = vmatmul.mubr.f32.gmra.mxu0 %v963
        %v1292 = vpop.f32.mrf.mxu0
        %v1293 = vadd.f32 %v1002, %v1292
        %v1294 = vpop.f32.mrf.mxu0
        %1295 = vmatprep.mubr.f32.mxu0 %v1084
        %1296 = vmatmul.mubr.f32.gmra.mxu0 %v965
        %v1297 = vpop.f32.mrf.mxu0
        %v1298 = vadd.f32 %v1002, %v1297
        %v1299 = vpop.f32.mrf.mxu0
        %1300 = vmatprep.mubr.f32.mxu0 %v1087
        %1301 = vmatmul.mubr.f32.gmra.mxu0 %v967
        %v1302 = vpop.f32.mrf.mxu0
        %v1303 = vadd.f32 %v1002, %v1302
        %v1304 = vpop.f32.mrf.mxu0
        %1305 = vmatprep.mubr.f32.mxu0 %v1090
        %1306 = vmatmul.mubr.f32.gmra.mxu0 %v969
        %v1307 = vpop.f32.mrf.mxu0
        %v1308 = vadd.f32 %v1002, %v1307
        %v1309 = vpop.f32.mrf.mxu0
        %1310 = vmatprep.mubr.f32.mxu0 %v1093
        %1311 = vmatmul.mubr.f32.gmra.mxu0 %v971
        %v1312 = vpop.f32.mrf.mxu0
        %v1313 = vadd.f32 %v1002, %v1312
        %v1314 = vpop.f32.mrf.mxu0
        %1315 = vmatprep.mubr.f32.mxu0 %v1096
        %1316 = vmatmul.mubr.f32.gmra.mxu0 %v973
        %v1317 = vpop.f32.mrf.mxu0
        %v1318 = vadd.f32 %v1002, %v1317
        %v1319 = vpop.f32.mrf.mxu0
        %1320 = vmatprep.mubr.f32.mxu0 %v1099
        %1321 = vmatmul.mubr.f32.gmra.mxu0 %v975
        %v1322 = vpop.f32.mrf.mxu0
        %v1323 = vadd.f32 %v1002, %v1322
        %v1324 = vpop.f32.mrf.mxu0
        %1325 = vdwg.mxu0
        %v1326 = vmax.f32 %v1168, 0.0
        %v1327 = vmax.f32 %v1173, 0.0
        %v1328 = vmax.f32 %v1178, 0.0
        %v1329 = vmax.f32 %v1183, 0.0
        %v1330 = vmax.f32 %v1188, 0.0
        %v1331 = vmax.f32 %v1193, 0.0
        %v1332 = vmax.f32 %v1198, 0.0
        %v1333 = vmax.f32 %v1203, 0.0
        %v1334 = vmax.f32 %v1208, 0.0
        %v1335 = vmax.f32 %v1213, 0.0
        %v1336 = vmax.f32 %v1218, 0.0
        %v1337 = vmax.f32 %v1223, 0.0
        %v1338 = vmax.f32 %v1228, 0.0
        %v1339 = vmax.f32 %v1233, 0.0
        %v1340 = vmax.f32 %v1238, 0.0
        %v1341 = vmax.f32 %v1243, 0.0
        %v1342 = vmax.f32 %v1248, 0.0
        %v1343 = vmax.f32 %v1253, 0.0
        %v1344 = vmax.f32 %v1258, 0.0
        %v1345 = vmax.f32 %v1263, 0.0
        %v1346 = vmax.f32 %v1268, 0.0
        %v1347 = vmax.f32 %v1273, 0.0
        %v1348 = vmax.f32 %v1278, 0.0
        %v1349 = vmax.f32 %v1283, 0.0
        %v1350 = vmax.f32 %v1288, 0.0
        %v1351 = vmax.f32 %v1293, 0.0
        %v1352 = vmax.f32 %v1298, 0.0
        %v1353 = vmax.f32 %v1303, 0.0
        %v1354 = vmax.f32 %v1308, 0.0
        %v1355 = vmax.f32 %v1313, 0.0
        %v1356 = vmax.f32 %v1318, 0.0
        %v1357 = vmax.f32 %v1323, 0.0
        %v1358 = vld [vmem:[%s5] sm:$0xff]
        %v1359 = vld [vmem:[%s5 + $0x8] sm:$0xff]
        %v1360 = vld [vmem:[%s5 + $0x10] sm:$0xff]
        %v1361 = vld [vmem:[%s5 + $0x18] sm:$0xff]
        %v1362 = vld [vmem:[%s5 + $0x20] sm:$0xff]
        %v1363 = vld [vmem:[%s5 + $0x28] sm:$0xff]
        %v1364 = vld [vmem:[%s5 + $0x30] sm:$0xff]
        %v1365 = vld [vmem:[%s5 + $0x38] sm:$0xff]
        %v1366 = vld [vmem:[%s5 + $0x40] sm:$0xff]
        %v1367 = vld [vmem:[%s5 + $0x48] sm:$0xff]
        %v1368 = vld [vmem:[%s6] sm:$0x1]
        %v1370 = vlaneseq
        %v1371 = vshrl.u32 %v1370, 7
        %v1372 = vsub.s32 0, %v1371
        %v1373 = vrot.slane %v1368, %v1372
        %vm1375 = vcmask 654336
        %v1377 = vsel %vm1375, %v1326, 0
        %v1380 = vsel %vm1375, %v1327, 0
        %v1383 = vsel %vm1375, %v1328, 0
        %v1386 = vsel %vm1375, %v1329, 0
        %v1389 = vsel %vm1375, %v1330, 0
        %v1392 = vsel %vm1375, %v1331, 0
        %v1395 = vsel %vm1375, %v1332, 0
        %v1398 = vsel %vm1375, %v1333, 0
        %v1401 = vsel %vm1375, %v1334, 0
        %v1404 = vsel %vm1375, %v1335, 0
        %v1407 = vsel %vm1375, %v1336, 0
        %v1410 = vsel %vm1375, %v1337, 0
        %v1413 = vsel %vm1375, %v1338, 0
        %v1416 = vsel %vm1375, %v1339, 0
        %v1419 = vsel %vm1375, %v1340, 0
        %v1422 = vsel %vm1375, %v1341, 0
        %v1425 = vsel %vm1375, %v1342, 0
        %v1428 = vsel %vm1375, %v1343, 0
        %v1431 = vsel %vm1375, %v1344, 0
        %v1434 = vsel %vm1375, %v1345, 0
        %v1437 = vsel %vm1375, %v1346, 0
        %v1440 = vsel %vm1375, %v1347, 0
        %v1443 = vsel %vm1375, %v1348, 0
        %v1446 = vsel %vm1375, %v1349, 0
        %v1449 = vsel %vm1375, %v1350, 0
        %v1452 = vsel %vm1375, %v1351, 0
        %v1455 = vsel %vm1375, %v1352, 0
        %v1458 = vsel %vm1375, %v1353, 0
        %v1461 = vsel %vm1375, %v1354, 0
        %v1464 = vsel %vm1375, %v1355, 0
        %v1467 = vsel %vm1375, %v1356, 0
        %v1470 = vsel %vm1375, %v1357, 0
        %1472 = vmatprep.subr.mxu0 0.0
        %1473 = vmatpush1.msra.mxu0 0.0
        %1474 = vmatprep.subr.mxu0 0.0
        %1475 = vmatpush1.msra.mxu0 0.0
        %1476 = vmatprep.subr.mxu0 0.0
        %1477 = vmatpush1.msra.mxu0 0.0
        %1478 = vmatprep.subr.mxu0 0.0
        %1479 = vmatpush1.msra.mxu0 0.0
        %1480 = vmatprep.subr.mxu0 0.0
        %1481 = vmatpush1.msra.mxu0 0.0
        %1482 = vmatprep.subr.mxu0 0.0
        %1483 = vmatpush1.msra.mxu0 0.0
        %1484 = vmatprep.subr.mxu0 0.0
        %1485 = vmatpush1.msra.mxu0 %v1367
        %1486 = vmatprep.subr.mxu0 0.0
        %1487 = vmatpush1.msra.mxu0 %v1366
        %1488 = vmatprep.subr.mxu0 0.0
        %1489 = vmatpush1.msra.mxu0 %v1365
        %1490 = vmatprep.subr.mxu0 0.0
        %1491 = vmatpush1.msra.mxu0 %v1364
        %1492 = vmatprep.subr.mxu0 0.0
        %1493 = vmatpush1.msra.mxu0 %v1363
        %1494 = vmatprep.subr.mxu0 0.0
        %1495 = vmatpush1.msra.mxu0 %v1362
        %1496 = vmatprep.subr.mxu0 0.0
        %1497 = vmatpush1.msra.mxu0 %v1361
        %1498 = vmatprep.subr.mxu0 0.0
        %1499 = vmatpush1.msra.mxu0 %v1360
        %1500 = vmatprep.subr.mxu0 0.0
        %1501 = vmatpush1.msra.mxu0 %v1359
        %1502 = vmatprep.subr.mxu0 0.0
        %1503 = vmatpush1.msra.mxu0 %v1358
        %1504 = vmatprep.subr.mxu0 0.0
        %1505 = vmatpush2.msra.mxu0 0.0
        %1506 = vmatprep.subr.mxu0 0.0
        %1507 = vmatpush2.msra.mxu0 0.0
        %1508 = vmatprep.subr.mxu0 0.0
        %1509 = vmatpush2.msra.mxu0 0.0
        %1510 = vmatprep.subr.mxu0 0.0
        %1511 = vmatpush2.msra.mxu0 0.0
        %1512 = vmatprep.subr.mxu0 0.0
        %1513 = vmatpush2.msra.mxu0 0.0
        %1514 = vmatprep.subr.mxu0 0.0
        %1515 = vmatpush2.msra.mxu0 0.0
        %1516 = vmatprep.subr.mxu0 0.0
        %1517 = vmatpush2.msra.mxu0 0.0
        %1518 = vmatprep.subr.mxu0 0.0
        %1519 = vmatpush2.msra.mxu0 0.0
        %1520 = vmatprep.subr.mxu0 0.0
        %1521 = vmatpush2.msra.mxu0 0.0
        %1522 = vmatprep.subr.mxu0 0.0
        %1523 = vmatpush2.msra.mxu0 0.0
        %1524 = vmatprep.subr.mxu0 0.0
        %1525 = vmatpush2.msra.mxu0 0.0
        %1526 = vmatprep.subr.mxu0 0.0
        %1527 = vmatpush2.msra.mxu0 0.0
        %1528 = vmatprep.subr.mxu0 0.0
        %1529 = vmatpush2.msra.mxu0 0.0
        %1530 = vmatprep.subr.mxu0 0.0
        %1531 = vmatpush2.msra.mxu0 0.0
        %1532 = vmatprep.subr.mxu0 0.0
        %1533 = vmatpush2.msra.mxu0 0.0
        %1534 = vmatprep.subr.mxu0 0.0
        %1535 = vmatpush2.msra.mxu0 0.0
        %1536 = vmatprep.mubr.f32.mxu0 0.0
        %1537 = vmatmul.mubr.f32.gmra.mxu0 %v1377
        %v1538 = vpop.f32.mrf.mxu0
        %v1539 = vadd.f32 %v1373, %v1538
        %v1540 = vpop.f32.mrf.mxu0
        %1541 = vmatprep.mubr.f32.mxu0 0.0
        %1542 = vmatmul.mubr.f32.gmra.mxu0 %v1380
        %v1543 = vpop.f32.mrf.mxu0
        %v1544 = vadd.f32 %v1373, %v1543
        %v1545 = vpop.f32.mrf.mxu0
        %1546 = vmatprep.mubr.f32.mxu0 0.0
        %1547 = vmatmul.mubr.f32.gmra.mxu0 %v1383
        %v1548 = vpop.f32.mrf.mxu0
        %v1549 = vadd.f32 %v1373, %v1548
        %v1550 = vpop.f32.mrf.mxu0
        %1551 = vmatprep.mubr.f32.mxu0 0.0
        %1552 = vmatmul.mubr.f32.gmra.mxu0 %v1386
        %v1553 = vpop.f32.mrf.mxu0
        %v1554 = vadd.f32 %v1373, %v1553
        %v1555 = vpop.f32.mrf.mxu0
        %1556 = vmatprep.mubr.f32.mxu0 0.0
        %1557 = vmatmul.mubr.f32.gmra.mxu0 %v1389
        %v1558 = vpop.f32.mrf.mxu0
        %v1559 = vadd.f32 %v1373, %v1558
        %v1560 = vpop.f32.mrf.mxu0
        %1561 = vmatprep.mubr.f32.mxu0 0.0
        %1562 = vmatmul.mubr.f32.gmra.mxu0 %v1392
        %v1563 = vpop.f32.mrf.mxu0
        %v1564 = vadd.f32 %v1373, %v1563
        %v1565 = vpop.f32.mrf.mxu0
        %1566 = vmatprep.mubr.f32.mxu0 0.0
        %1567 = vmatmul.mubr.f32.gmra.mxu0 %v1395
        %v1568 = vpop.f32.mrf.mxu0
        %v1569 = vadd.f32 %v1373, %v1568
        %v1570 = vpop.f32.mrf.mxu0
        %1571 = vmatprep.mubr.f32.mxu0 0.0
        %1572 = vmatmul.mubr.f32.gmra.mxu0 %v1398
        %v1573 = vpop.f32.mrf.mxu0
        %v1574 = vadd.f32 %v1373, %v1573
        %v1575 = vpop.f32.mrf.mxu0
        %1576 = vmatprep.mubr.f32.mxu0 0.0
        %1577 = vmatmul.mubr.f32.gmra.mxu0 %v1401
        %v1578 = vpop.f32.mrf.mxu0
        %v1579 = vadd.f32 %v1373, %v1578
        %v1580 = vpop.f32.mrf.mxu0
        %1581 = vmatprep.mubr.f32.mxu0 0.0
        %1582 = vmatmul.mubr.f32.gmra.mxu0 %v1404
        %v1583 = vpop.f32.mrf.mxu0
        %v1584 = vadd.f32 %v1373, %v1583
        %v1585 = vpop.f32.mrf.mxu0
        %1586 = vmatprep.mubr.f32.mxu0 0.0
        %1587 = vmatmul.mubr.f32.gmra.mxu0 %v1407
        %v1588 = vpop.f32.mrf.mxu0
        %v1589 = vadd.f32 %v1373, %v1588
        %v1590 = vpop.f32.mrf.mxu0
        %1591 = vmatprep.mubr.f32.mxu0 0.0
        %1592 = vmatmul.mubr.f32.gmra.mxu0 %v1410
        %v1593 = vpop.f32.mrf.mxu0
        %v1594 = vadd.f32 %v1373, %v1593
        %v1595 = vpop.f32.mrf.mxu0
        %1596 = vmatprep.mubr.f32.mxu0 0.0
        %1597 = vmatmul.mubr.f32.gmra.mxu0 %v1413
        %v1598 = vpop.f32.mrf.mxu0
        %v1599 = vadd.f32 %v1373, %v1598
        %v1600 = vpop.f32.mrf.mxu0
        %1601 = vmatprep.mubr.f32.mxu0 0.0
        %1602 = vmatmul.mubr.f32.gmra.mxu0 %v1416
        %v1603 = vpop.f32.mrf.mxu0
        %v1604 = vadd.f32 %v1373, %v1603
        %v1605 = vpop.f32.mrf.mxu0
        %1606 = vmatprep.mubr.f32.mxu0 0.0
        %1607 = vmatmul.mubr.f32.gmra.mxu0 %v1419
        %v1608 = vpop.f32.mrf.mxu0
        %v1609 = vadd.f32 %v1373, %v1608
        %v1610 = vpop.f32.mrf.mxu0
        %1611 = vmatprep.mubr.f32.mxu0 0.0
        %1612 = vmatmul.mubr.f32.gmra.mxu0 %v1422
        %v1613 = vpop.f32.mrf.mxu0
        %v1614 = vadd.f32 %v1373, %v1613
        %v1615 = vpop.f32.mrf.mxu0
        %1616 = vmatprep.mubr.f32.mxu0 0.0
        %1617 = vmatmul.mubr.f32.gmra.mxu0 %v1425
        %v1618 = vpop.f32.mrf.mxu0
        %v1619 = vadd.f32 %v1373, %v1618
        %v1620 = vpop.f32.mrf.mxu0
        %1621 = vmatprep.mubr.f32.mxu0 0.0
        %1622 = vmatmul.mubr.f32.gmra.mxu0 %v1428
        %v1623 = vpop.f32.mrf.mxu0
        %v1624 = vadd.f32 %v1373, %v1623
        %v1625 = vpop.f32.mrf.mxu0
        %1626 = vmatprep.mubr.f32.mxu0 0.0
        %1627 = vmatmul.mubr.f32.gmra.mxu0 %v1431
        %v1628 = vpop.f32.mrf.mxu0
        %v1629 = vadd.f32 %v1373, %v1628
        %v1630 = vpop.f32.mrf.mxu0
        %1631 = vmatprep.mubr.f32.mxu0 0.0
        %1632 = vmatmul.mubr.f32.gmra.mxu0 %v1434
        %v1633 = vpop.f32.mrf.mxu0
        %v1634 = vadd.f32 %v1373, %v1633
        %v1635 = vpop.f32.mrf.mxu0
        %1636 = vmatprep.mubr.f32.mxu0 0.0
        %1637 = vmatmul.mubr.f32.gmra.mxu0 %v1437
        %v1638 = vpop.f32.mrf.mxu0
        %v1639 = vadd.f32 %v1373, %v1638
        %v1640 = vpop.f32.mrf.mxu0
        %1641 = vmatprep.mubr.f32.mxu0 0.0
        %1642 = vmatmul.mubr.f32.gmra.mxu0 %v1440
        %v1643 = vpop.f32.mrf.mxu0
        %v1644 = vadd.f32 %v1373, %v1643
        %v1645 = vpop.f32.mrf.mxu0
        %1646 = vmatprep.mubr.f32.mxu0 0.0
        %1647 = vmatmul.mubr.f32.gmra.mxu0 %v1443
        %v1648 = vpop.f32.mrf.mxu0
        %v1649 = vadd.f32 %v1373, %v1648
        %v1650 = vpop.f32.mrf.mxu0
        %1651 = vmatprep.mubr.f32.mxu0 0.0
        %1652 = vmatmul.mubr.f32.gmra.mxu0 %v1446
        %v1653 = vpop.f32.mrf.mxu0
        %v1654 = vadd.f32 %v1373, %v1653
        %v1655 = vpop.f32.mrf.mxu0
        %1656 = vmatprep.mubr.f32.mxu0 0.0
        %1657 = vmatmul.mubr.f32.gmra.mxu0 %v1449
        %v1658 = vpop.f32.mrf.mxu0
        %v1659 = vadd.f32 %v1373, %v1658
        %v1660 = vpop.f32.mrf.mxu0
        %1661 = vmatprep.mubr.f32.mxu0 0.0
        %1662 = vmatmul.mubr.f32.gmra.mxu0 %v1452
        %v1663 = vpop.f32.mrf.mxu0
        %v1664 = vadd.f32 %v1373, %v1663
        %v1665 = vpop.f32.mrf.mxu0
        %1666 = vmatprep.mubr.f32.mxu0 0.0
        %1667 = vmatmul.mubr.f32.gmra.mxu0 %v1455
        %v1668 = vpop.f32.mrf.mxu0
        %v1669 = vadd.f32 %v1373, %v1668
        %v1670 = vpop.f32.mrf.mxu0
        %1671 = vmatprep.mubr.f32.mxu0 0.0
        %1672 = vmatmul.mubr.f32.gmra.mxu0 %v1458
        %v1673 = vpop.f32.mrf.mxu0
        %v1674 = vadd.f32 %v1373, %v1673
        %v1675 = vpop.f32.mrf.mxu0
        %1676 = vmatprep.mubr.f32.mxu0 0.0
        %1677 = vmatmul.mubr.f32.gmra.mxu0 %v1461
        %v1678 = vpop.f32.mrf.mxu0
        %v1679 = vadd.f32 %v1373, %v1678
        %v1680 = vpop.f32.mrf.mxu0
        %1681 = vmatprep.mubr.f32.mxu0 0.0
        %1682 = vmatmul.mubr.f32.gmra.mxu0 %v1464
        %v1683 = vpop.f32.mrf.mxu0
        %v1684 = vadd.f32 %v1373, %v1683
        %v1685 = vpop.f32.mrf.mxu0
        %1686 = vmatprep.mubr.f32.mxu0 0.0
        %1687 = vmatmul.mubr.f32.gmra.mxu0 %v1467
        %v1688 = vpop.f32.mrf.mxu0
        %v1689 = vadd.f32 %v1373, %v1688
        %v1690 = vpop.f32.mrf.mxu0
        %1691 = vmatprep.mubr.f32.mxu0 0.0
        %1692 = vmatmul.mubr.f32.gmra.mxu0 %v1470
        %v1693 = vpop.f32.mrf.mxu0
        %v1694 = vadd.f32 %v1373, %v1693
        %v1695 = vpop.f32.mrf.mxu0
        %1696 = vdwg.mxu0
        %1697 = vst [vmem:[%s514] sm:$0xff] %v1539
        %1698 = vst [vmem:[%s514 + $0x8] sm:$0xff] %v1544
        %1699 = vst [vmem:[%s514 + $0x10] sm:$0xff] %v1549
        %1700 = vst [vmem:[%s514 + $0x18] sm:$0xff] %v1554
        %1701 = vst [vmem:[%s514 + $0x20] sm:$0xff] %v1559
        %1702 = vst [vmem:[%s514 + $0x28] sm:$0xff] %v1564
        %1703 = vst [vmem:[%s514 + $0x30] sm:$0xff] %v1569
        %1704 = vst [vmem:[%s514 + $0x38] sm:$0xff] %v1574
        %1705 = vst [vmem:[%s514 + $0x40] sm:$0xff] %v1579
        %1706 = vst [vmem:[%s514 + $0x48] sm:$0xff] %v1584
        %1707 = vst [vmem:[%s514 + $0x50] sm:$0xff] %v1589
        %1708 = vst [vmem:[%s514 + $0x58] sm:$0xff] %v1594
        %1709 = vst [vmem:[%s514 + $0x60] sm:$0xff] %v1599
        %1710 = vst [vmem:[%s514 + $0x68] sm:$0xff] %v1604
        %1711 = vst [vmem:[%s514 + $0x70] sm:$0xff] %v1609
        %1712 = vst [vmem:[%s514 + $0x78] sm:$0xff] %v1614
        %1713 = vst [vmem:[%s514 + $0x80] sm:$0xff] %v1619
        %1714 = vst [vmem:[%s514 + $0x88] sm:$0xff] %v1624
        %1715 = vst [vmem:[%s514 + $0x90] sm:$0xff] %v1629
        %1716 = vst [vmem:[%s514 + $0x98] sm:$0xff] %v1634
        %1717 = vst [vmem:[%s514 + $0xa0] sm:$0xff] %v1639
        %1718 = vst [vmem:[%s514 + $0xa8] sm:$0xff] %v1644
        %1719 = vst [vmem:[%s514 + $0xb0] sm:$0xff] %v1649
        %1720 = vst [vmem:[%s514 + $0xb8] sm:$0xff] %v1654
        %1721 = vst [vmem:[%s514 + $0xc0] sm:$0xff] %v1659
        %1722 = vst [vmem:[%s514 + $0xc8] sm:$0xff] %v1664
        %1723 = vst [vmem:[%s514 + $0xd0] sm:$0xff] %v1669
        %1724 = vst [vmem:[%s514 + $0xd8] sm:$0xff] %v1674
        %1725 = vst [vmem:[%s514 + $0xe0] sm:$0xff] %v1679
        %1726 = vst [vmem:[%s514 + $0xe8] sm:$0xff] %v1684
        %1727 = vst [vmem:[%s514 + $0xf0] sm:$0xff] %v1689
        %1728 = vst [vmem:[%s514 + $0xf8] sm:$0xff] %v1694
        %v1729 = vld [vmem:[%s7] sm:$0xff]
        %v1730 = vld [vmem:[%s7 + $0x8] sm:$0xff]
        %v1731 = vld [vmem:[%s7 + $0x10] sm:$0xff]
        %v1732 = vld [vmem:[%s7 + $0x18] sm:$0xff]
        %v1733 = vld [vmem:[%s7 + $0x20] sm:$0xff]
        %v1734 = vld [vmem:[%s7 + $0x28] sm:$0xff]
        %v1735 = vld [vmem:[%s7 + $0x30] sm:$0xff]
        %v1736 = vld [vmem:[%s7 + $0x38] sm:$0xff]
        %v1737 = vld [vmem:[%s7 + $0x40] sm:$0xff]
        %v1738 = vld [vmem:[%s7 + $0x48] sm:$0xff]
        %v1739 = vld [vmem:[%s7 + $0x50] sm:$0xff]
        %v1740 = vld [vmem:[%s7 + $0x58] sm:$0xff]
        %v1741 = vld [vmem:[%s7 + $0x60] sm:$0xff]
        %v1742 = vld [vmem:[%s7 + $0x68] sm:$0xff]
        %v1743 = vld [vmem:[%s7 + $0x70] sm:$0xff]
        %v1744 = vld [vmem:[%s7 + $0x78] sm:$0xff]
        %v1745 = vld [vmem:[%s8] sm:$0x1]
        %v1747 = vlaneseq
        %v1748 = vshrl.u32 %v1747, 7
        %v1749 = vsub.s32 0, %v1748
        %v1750 = vrot.slane %v1745, %v1749
        %1752 = vmatprep.subr.mxu0 0.0
        %1753 = vmatpush1.msra.mxu0 %v1744
        %1754 = vmatprep.subr.mxu0 0.0
        %1755 = vmatpush1.msra.mxu0 %v1743
        %1756 = vmatprep.subr.mxu0 0.0
        %1757 = vmatpush1.msra.mxu0 %v1742
        %1758 = vmatprep.subr.mxu0 0.0
        %1759 = vmatpush1.msra.mxu0 %v1741
        %1760 = vmatprep.subr.mxu0 0.0
        %1761 = vmatpush1.msra.mxu0 %v1740
        %1762 = vmatprep.subr.mxu0 0.0
        %1763 = vmatpush1.msra.mxu0 %v1739
        %1764 = vmatprep.subr.mxu0 0.0
        %1765 = vmatpush1.msra.mxu0 %v1738
        %1766 = vmatprep.subr.mxu0 0.0
        %1767 = vmatpush1.msra.mxu0 %v1737
        %1768 = vmatprep.subr.mxu0 0.0
        %1769 = vmatpush1.msra.mxu0 %v1736
        %1770 = vmatprep.subr.mxu0 0.0
        %1771 = vmatpush1.msra.mxu0 %v1735
        %1772 = vmatprep.subr.mxu0 0.0
        %1773 = vmatpush1.msra.mxu0 %v1734
        %1774 = vmatprep.subr.mxu0 0.0
        %1775 = vmatpush1.msra.mxu0 %v1733
        %1776 = vmatprep.subr.mxu0 0.0
        %1777 = vmatpush1.msra.mxu0 %v1732
        %1778 = vmatprep.subr.mxu0 0.0
        %1779 = vmatpush1.msra.mxu0 %v1731
        %1780 = vmatprep.subr.mxu0 0.0
        %1781 = vmatpush1.msra.mxu0 %v1730
        %1782 = vmatprep.subr.mxu0 0.0
        %1783 = vmatpush1.msra.mxu0 %v1729
        %1784 = vmatprep.subr.mxu0 0.0
        %1785 = vmatpush2.msra.mxu0 0.0
        %1786 = vmatprep.subr.mxu0 0.0
        %1787 = vmatpush2.msra.mxu0 0.0
        %1788 = vmatprep.subr.mxu0 0.0
        %1789 = vmatpush2.msra.mxu0 0.0
        %1790 = vmatprep.subr.mxu0 0.0
        %1791 = vmatpush2.msra.mxu0 0.0
        %1792 = vmatprep.subr.mxu0 0.0
        %1793 = vmatpush2.msra.mxu0 0.0
        %1794 = vmatprep.subr.mxu0 0.0
        %1795 = vmatpush2.msra.mxu0 0.0
        %1796 = vmatprep.subr.mxu0 0.0
        %1797 = vmatpush2.msra.mxu0 0.0
        %1798 = vmatprep.subr.mxu0 0.0
        %1799 = vmatpush2.msra.mxu0 0.0
        %1800 = vmatprep.subr.mxu0 0.0
        %1801 = vmatpush2.msra.mxu0 0.0
        %1802 = vmatprep.subr.mxu0 0.0
        %1803 = vmatpush2.msra.mxu0 0.0
        %1804 = vmatprep.subr.mxu0 0.0
        %1805 = vmatpush2.msra.mxu0 0.0
        %1806 = vmatprep.subr.mxu0 0.0
        %1807 = vmatpush2.msra.mxu0 0.0
        %1808 = vmatprep.subr.mxu0 0.0
        %1809 = vmatpush2.msra.mxu0 0.0
        %1810 = vmatprep.subr.mxu0 0.0
        %1811 = vmatpush2.msra.mxu0 0.0
        %1812 = vmatprep.subr.mxu0 0.0
        %1813 = vmatpush2.msra.mxu0 0.0
        %1814 = vmatprep.subr.mxu0 0.0
        %1815 = vmatpush2.msra.mxu0 0.0
        %1816 = vmatprep.mubr.f32.mxu0 0.0
        %1817 = vmatmul.mubr.f32.gmra.mxu0 %v1539
        %v1818 = vpop.f32.mrf.mxu0
        %v1819 = vadd.f32 %v1750, %v1818
        %v1820 = vpop.f32.mrf.mxu0
        %1821 = vmatprep.mubr.f32.mxu0 0.0
        %1822 = vmatmul.mubr.f32.gmra.mxu0 %v1544
        %v1823 = vpop.f32.mrf.mxu0
        %v1824 = vadd.f32 %v1750, %v1823
        %v1825 = vpop.f32.mrf.mxu0
        %1826 = vmatprep.mubr.f32.mxu0 0.0
        %1827 = vmatmul.mubr.f32.gmra.mxu0 %v1549
        %v1828 = vpop.f32.mrf.mxu0
        %v1829 = vadd.f32 %v1750, %v1828
        %v1830 = vpop.f32.mrf.mxu0
        %1831 = vmatprep.mubr.f32.mxu0 0.0
        %1832 = vmatmul.mubr.f32.gmra.mxu0 %v1554
        %v1833 = vpop.f32.mrf.mxu0
        %v1834 = vadd.f32 %v1750, %v1833
        %v1835 = vpop.f32.mrf.mxu0
        %1836 = vmatprep.mubr.f32.mxu0 0.0
        %1837 = vmatmul.mubr.f32.gmra.mxu0 %v1559
        %v1838 = vpop.f32.mrf.mxu0
        %v1839 = vadd.f32 %v1750, %v1838
        %v1840 = vpop.f32.mrf.mxu0
        %1841 = vmatprep.mubr.f32.mxu0 0.0
        %1842 = vmatmul.mubr.f32.gmra.mxu0 %v1564
        %v1843 = vpop.f32.mrf.mxu0
        %v1844 = vadd.f32 %v1750, %v1843
        %v1845 = vpop.f32.mrf.mxu0
        %1846 = vmatprep.mubr.f32.mxu0 0.0
        %1847 = vmatmul.mubr.f32.gmra.mxu0 %v1569
        %v1848 = vpop.f32.mrf.mxu0
        %v1849 = vadd.f32 %v1750, %v1848
        %v1850 = vpop.f32.mrf.mxu0
        %1851 = vmatprep.mubr.f32.mxu0 0.0
        %1852 = vmatmul.mubr.f32.gmra.mxu0 %v1574
        %v1853 = vpop.f32.mrf.mxu0
        %v1854 = vadd.f32 %v1750, %v1853
        %v1855 = vpop.f32.mrf.mxu0
        %1856 = vmatprep.mubr.f32.mxu0 0.0
        %1857 = vmatmul.mubr.f32.gmra.mxu0 %v1579
        %v1858 = vpop.f32.mrf.mxu0
        %v1859 = vadd.f32 %v1750, %v1858
        %v1860 = vpop.f32.mrf.mxu0
        %1861 = vmatprep.mubr.f32.mxu0 0.0
        %1862 = vmatmul.mubr.f32.gmra.mxu0 %v1584
        %v1863 = vpop.f32.mrf.mxu0
        %v1864 = vadd.f32 %v1750, %v1863
        %v1865 = vpop.f32.mrf.mxu0
        %1866 = vmatprep.mubr.f32.mxu0 0.0
        %1867 = vmatmul.mubr.f32.gmra.mxu0 %v1589
        %v1868 = vpop.f32.mrf.mxu0
        %v1869 = vadd.f32 %v1750, %v1868
        %v1870 = vpop.f32.mrf.mxu0
        %1871 = vmatprep.mubr.f32.mxu0 0.0
        %1872 = vmatmul.mubr.f32.gmra.mxu0 %v1594
        %v1873 = vpop.f32.mrf.mxu0
        %v1874 = vadd.f32 %v1750, %v1873
        %v1875 = vpop.f32.mrf.mxu0
        %1876 = vmatprep.mubr.f32.mxu0 0.0
        %1877 = vmatmul.mubr.f32.gmra.mxu0 %v1599
        %v1878 = vpop.f32.mrf.mxu0
        %v1879 = vadd.f32 %v1750, %v1878
        %v1880 = vpop.f32.mrf.mxu0
        %1881 = vmatprep.mubr.f32.mxu0 0.0
        %1882 = vmatmul.mubr.f32.gmra.mxu0 %v1604
        %v1883 = vpop.f32.mrf.mxu0
        %v1884 = vadd.f32 %v1750, %v1883
        %v1885 = vpop.f32.mrf.mxu0
        %1886 = vmatprep.mubr.f32.mxu0 0.0
        %1887 = vmatmul.mubr.f32.gmra.mxu0 %v1609
        %v1888 = vpop.f32.mrf.mxu0
        %v1889 = vadd.f32 %v1750, %v1888
        %v1890 = vpop.f32.mrf.mxu0
        %1891 = vmatprep.mubr.f32.mxu0 0.0
        %1892 = vmatmul.mubr.f32.gmra.mxu0 %v1614
        %v1893 = vpop.f32.mrf.mxu0
        %v1894 = vadd.f32 %v1750, %v1893
        %v1895 = vpop.f32.mrf.mxu0
        %1896 = vmatprep.mubr.f32.mxu0 0.0
        %1897 = vmatmul.mubr.f32.gmra.mxu0 %v1619
        %v1898 = vpop.f32.mrf.mxu0
        %v1899 = vadd.f32 %v1750, %v1898
        %v1900 = vpop.f32.mrf.mxu0
        %1901 = vmatprep.mubr.f32.mxu0 0.0
        %1902 = vmatmul.mubr.f32.gmra.mxu0 %v1624
        %v1903 = vpop.f32.mrf.mxu0
        %v1904 = vadd.f32 %v1750, %v1903
        %v1905 = vpop.f32.mrf.mxu0
        %1906 = vmatprep.mubr.f32.mxu0 0.0
        %1907 = vmatmul.mubr.f32.gmra.mxu0 %v1629
        %v1908 = vpop.f32.mrf.mxu0
        %v1909 = vadd.f32 %v1750, %v1908
        %v1910 = vpop.f32.mrf.mxu0
        %1911 = vmatprep.mubr.f32.mxu0 0.0
        %1912 = vmatmul.mubr.f32.gmra.mxu0 %v1634
        %v1913 = vpop.f32.mrf.mxu0
        %v1914 = vadd.f32 %v1750, %v1913
        %v1915 = vpop.f32.mrf.mxu0
        %1916 = vmatprep.mubr.f32.mxu0 0.0
        %1917 = vmatmul.mubr.f32.gmra.mxu0 %v1639
        %v1918 = vpop.f32.mrf.mxu0
        %v1919 = vadd.f32 %v1750, %v1918
        %v1920 = vpop.f32.mrf.mxu0
        %1921 = vmatprep.mubr.f32.mxu0 0.0
        %1922 = vmatmul.mubr.f32.gmra.mxu0 %v1644
        %v1923 = vpop.f32.mrf.mxu0
        %v1924 = vadd.f32 %v1750, %v1923
        %v1925 = vpop.f32.mrf.mxu0
        %1926 = vmatprep.mubr.f32.mxu0 0.0
        %1927 = vmatmul.mubr.f32.gmra.mxu0 %v1649
        %v1928 = vpop.f32.mrf.mxu0
        %v1929 = vadd.f32 %v1750, %v1928
        %v1930 = vpop.f32.mrf.mxu0
        %1931 = vmatprep.mubr.f32.mxu0 0.0
        %1932 = vmatmul.mubr.f32.gmra.mxu0 %v1654
        %v1933 = vpop.f32.mrf.mxu0
        %v1934 = vadd.f32 %v1750, %v1933
        %v1935 = vpop.f32.mrf.mxu0
        %1936 = vmatprep.mubr.f32.mxu0 0.0
        %1937 = vmatmul.mubr.f32.gmra.mxu0 %v1659
        %v1938 = vpop.f32.mrf.mxu0
        %v1939 = vadd.f32 %v1750, %v1938
        %v1940 = vpop.f32.mrf.mxu0
        %1941 = vmatprep.mubr.f32.mxu0 0.0
        %1942 = vmatmul.mubr.f32.gmra.mxu0 %v1664
        %v1943 = vpop.f32.mrf.mxu0
        %v1944 = vadd.f32 %v1750, %v1943
        %v1945 = vpop.f32.mrf.mxu0
        %1946 = vmatprep.mubr.f32.mxu0 0.0
        %1947 = vmatmul.mubr.f32.gmra.mxu0 %v1669
        %v1948 = vpop.f32.mrf.mxu0
        %v1949 = vadd.f32 %v1750, %v1948
        %v1950 = vpop.f32.mrf.mxu0
        %1951 = vmatprep.mubr.f32.mxu0 0.0
        %1952 = vmatmul.mubr.f32.gmra.mxu0 %v1674
        %v1953 = vpop.f32.mrf.mxu0
        %v1954 = vadd.f32 %v1750, %v1953
        %v1955 = vpop.f32.mrf.mxu0
        %1956 = vmatprep.mubr.f32.mxu0 0.0
        %1957 = vmatmul.mubr.f32.gmra.mxu0 %v1679
        %v1958 = vpop.f32.mrf.mxu0
        %v1959 = vadd.f32 %v1750, %v1958
        %v1960 = vpop.f32.mrf.mxu0
        %1961 = vmatprep.mubr.f32.mxu0 0.0
        %1962 = vmatmul.mubr.f32.gmra.mxu0 %v1684
        %v1963 = vpop.f32.mrf.mxu0
        %v1964 = vadd.f32 %v1750, %v1963
        %v1965 = vpop.f32.mrf.mxu0
        %1966 = vmatprep.mubr.f32.mxu0 0.0
        %1967 = vmatmul.mubr.f32.gmra.mxu0 %v1689
        %v1968 = vpop.f32.mrf.mxu0
        %v1969 = vadd.f32 %v1750, %v1968
        %v1970 = vpop.f32.mrf.mxu0
        %1971 = vmatprep.mubr.f32.mxu0 0.0
        %1972 = vmatmul.mubr.f32.gmra.mxu0 %v1694
        %v1973 = vpop.f32.mrf.mxu0
        %v1974 = vadd.f32 %v1750, %v1973
        %v1975 = vpop.f32.mrf.mxu0
        %1976 = vdwg.mxu0
        %v1977 = vmax.f32 %v1819, 0.0
        %v1978 = vmax.f32 %v1824, 0.0
        %v1979 = vmax.f32 %v1829, 0.0
        %v1980 = vmax.f32 %v1834, 0.0
        %v1981 = vmax.f32 %v1839, 0.0
        %v1982 = vmax.f32 %v1844, 0.0
        %v1983 = vmax.f32 %v1849, 0.0
        %v1984 = vmax.f32 %v1854, 0.0
        %v1985 = vmax.f32 %v1859, 0.0
        %v1986 = vmax.f32 %v1864, 0.0
        %v1987 = vmax.f32 %v1869, 0.0
        %v1988 = vmax.f32 %v1874, 0.0
        %v1989 = vmax.f32 %v1879, 0.0
        %v1990 = vmax.f32 %v1884, 0.0
        %v1991 = vmax.f32 %v1889, 0.0
        %v1992 = vmax.f32 %v1894, 0.0
        %v1993 = vmax.f32 %v1899, 0.0
        %v1994 = vmax.f32 %v1904, 0.0
        %v1995 = vmax.f32 %v1909, 0.0
        %v1996 = vmax.f32 %v1914, 0.0
        %v1997 = vmax.f32 %v1919, 0.0
        %v1998 = vmax.f32 %v1924, 0.0
        %v1999 = vmax.f32 %v1929, 0.0
        %v2000 = vmax.f32 %v1934, 0.0
        %v2001 = vmax.f32 %v1939, 0.0
        %v2002 = vmax.f32 %v1944, 0.0
        %v2003 = vmax.f32 %v1949, 0.0
        %v2004 = vmax.f32 %v1954, 0.0
        %v2005 = vmax.f32 %v1959, 0.0
        %v2006 = vmax.f32 %v1964, 0.0
        %v2007 = vmax.f32 %v1969, 0.0
        %v2008 = vmax.f32 %v1974, 0.0
        %v2009 = vld [vmem:[#allocation2] sm:$0xff]
        %v2010 = vld [vmem:[#allocation2 + $0x8] sm:$0xff]
        %v2011 = vld [vmem:[#allocation2 + $0x10] sm:$0xff]
        %v2012 = vld [vmem:[#allocation2 + $0x18] sm:$0xff]
        %v2013 = vld [vmem:[#allocation2 + $0x20] sm:$0xff]
        %v2014 = vld [vmem:[#allocation2 + $0x28] sm:$0xff]
        %v2015 = vld [vmem:[#allocation2 + $0x30] sm:$0xff]
        %v2016 = vld [vmem:[#allocation2 + $0x38] sm:$0xff]
        %v2017 = vld [vmem:[#allocation2 + $0x40] sm:$0xff]
        %v2018 = vld [vmem:[#allocation2 + $0x48] sm:$0xff]
        %v2019 = vld [vmem:[#allocation2 + $0x50] sm:$0xff]
        %v2020 = vld [vmem:[#allocation2 + $0x58] sm:$0xff]
        %v2021 = vld [vmem:[#allocation2 + $0x60] sm:$0xff]
        %v2022 = vld [vmem:[#allocation2 + $0x68] sm:$0xff]
        %v2023 = vld [vmem:[#allocation2 + $0x70] sm:$0xff]
        %v2024 = vld [vmem:[#allocation2 + $0x78] sm:$0xff]
        %v2025 = vld [vmem:[#allocation2 + $0x80] sm:$0xff]
        %v2026 = vld [vmem:[#allocation2 + $0x88] sm:$0xff]
        %v2027 = vld [vmem:[#allocation2 + $0x90] sm:$0xff]
        %v2028 = vld [vmem:[#allocation2 + $0x98] sm:$0xff]
        %v2029 = vld [vmem:[%s10] sm:$0x3]
        %v2031 = vlaneseq
        %v2032 = vshrl.u32 %v2031, 7
        %v2033 = vsub.s32 0, %v2032
        %v2034 = vrot.slane %v2029, %v2033
        %v2035 = vlaneseq
        %v2036 = vshrl.u32 %v2035, 7
        %v2037 = vsub.s32 1, %v2036
        %v2038 = vrot.slane %v2029, %v2037
        %v2042 = vsel %vm1375, %v1977, 0
        %v2045 = vsel %vm1375, %v1978, 0
        %v2048 = vsel %vm1375, %v1979, 0
        %v2051 = vsel %vm1375, %v1980, 0
        %v2054 = vsel %vm1375, %v1981, 0
        %v2057 = vsel %vm1375, %v1982, 0
        %v2060 = vsel %vm1375, %v1983, 0
        %v2063 = vsel %vm1375, %v1984, 0
        %v2066 = vsel %vm1375, %v1985, 0
        %v2069 = vsel %vm1375, %v1986, 0
        %v2072 = vsel %vm1375, %v1987, 0
        %v2075 = vsel %vm1375, %v1988, 0
        %v2078 = vsel %vm1375, %v1989, 0
        %v2081 = vsel %vm1375, %v1990, 0
        %v2084 = vsel %vm1375, %v1991, 0
        %v2087 = vsel %vm1375, %v1992, 0
        %v2090 = vsel %vm1375, %v1993, 0
        %v2093 = vsel %vm1375, %v1994, 0
        %v2096 = vsel %vm1375, %v1995, 0
        %v2099 = vsel %vm1375, %v1996, 0
        %v2102 = vsel %vm1375, %v1997, 0
        %v2105 = vsel %vm1375, %v1998, 0
        %v2108 = vsel %vm1375, %v1999, 0
        %v2111 = vsel %vm1375, %v2000, 0
        %v2114 = vsel %vm1375, %v2001, 0
        %v2117 = vsel %vm1375, %v2002, 0
        %v2120 = vsel %vm1375, %v2003, 0
        %v2123 = vsel %vm1375, %v2004, 0
        %v2126 = vsel %vm1375, %v2005, 0
        %v2129 = vsel %vm1375, %v2006, 0
        %v2132 = vsel %vm1375, %v2007, 0
        %v2135 = vsel %vm1375, %v2008, 0
        %2137 = vmatprep.subr.mxu0 0.0
        %2138 = vmatpush1.msra.mxu0 0.0
        %2139 = vmatprep.subr.mxu0 0.0
        %2140 = vmatpush1.msra.mxu0 0.0
        %2141 = vmatprep.subr.mxu0 0.0
        %2142 = vmatpush1.msra.mxu0 0.0
        %2143 = vmatprep.subr.mxu0 0.0
        %2144 = vmatpush1.msra.mxu0 0.0
        %2145 = vmatprep.subr.mxu0 0.0
        %2146 = vmatpush1.msra.mxu0 0.0
        %2147 = vmatprep.subr.mxu0 0.0
        %2148 = vmatpush1.msra.mxu0 0.0
        %2149 = vmatprep.subr.mxu0 %v2028
        %2150 = vmatpush1.msra.mxu0 %v2027
        %2151 = vmatprep.subr.mxu0 %v2026
        %2152 = vmatpush1.msra.mxu0 %v2025
        %2153 = vmatprep.subr.mxu0 %v2024
        %2154 = vmatpush1.msra.mxu0 %v2023
        %2155 = vmatprep.subr.mxu0 %v2022
        %2156 = vmatpush1.msra.mxu0 %v2021
        %2157 = vmatprep.subr.mxu0 %v2020
        %2158 = vmatpush1.msra.mxu0 %v2019
        %2159 = vmatprep.subr.mxu0 %v2018
        %2160 = vmatpush1.msra.mxu0 %v2017
        %2161 = vmatprep.subr.mxu0 %v2016
        %2162 = vmatpush1.msra.mxu0 %v2015
        %2163 = vmatprep.subr.mxu0 %v2014
        %2164 = vmatpush1.msra.mxu0 %v2013
        %2165 = vmatprep.subr.mxu0 %v2012
        %2166 = vmatpush1.msra.mxu0 %v2011
        %2167 = vmatprep.subr.mxu0 %v2010
        %2168 = vmatpush1.msra.mxu0 %v2009
        %2169 = vmatprep.subr.mxu0 0.0
        %2170 = vmatpush2.msra.mxu0 0.0
        %2171 = vmatprep.subr.mxu0 0.0
        %2172 = vmatpush2.msra.mxu0 0.0
        %2173 = vmatprep.subr.mxu0 0.0
        %2174 = vmatpush2.msra.mxu0 0.0
        %2175 = vmatprep.subr.mxu0 0.0
        %2176 = vmatpush2.msra.mxu0 0.0
        %2177 = vmatprep.subr.mxu0 0.0
        %2178 = vmatpush2.msra.mxu0 0.0
        %2179 = vmatprep.subr.mxu0 0.0
        %2180 = vmatpush2.msra.mxu0 0.0
        %2181 = vmatprep.subr.mxu0 0.0
        %2182 = vmatpush2.msra.mxu0 0.0
        %2183 = vmatprep.subr.mxu0 0.0
        %2184 = vmatpush2.msra.mxu0 0.0
        %2185 = vmatprep.subr.mxu0 0.0
        %2186 = vmatpush2.msra.mxu0 0.0
        %2187 = vmatprep.subr.mxu0 0.0
        %2188 = vmatpush2.msra.mxu0 0.0
        %2189 = vmatprep.subr.mxu0 0.0
        %2190 = vmatpush2.msra.mxu0 0.0
        %2191 = vmatprep.subr.mxu0 0.0
        %2192 = vmatpush2.msra.mxu0 0.0
        %2193 = vmatprep.subr.mxu0 0.0
        %2194 = vmatpush2.msra.mxu0 0.0
        %2195 = vmatprep.subr.mxu0 0.0
        %2196 = vmatpush2.msra.mxu0 0.0
        %2197 = vmatprep.subr.mxu0 0.0
        %2198 = vmatpush2.msra.mxu0 0.0
        %2199 = vmatprep.subr.mxu0 0.0
        %2200 = vmatpush2.msra.mxu0 0.0
        %2201 = vmatprep.mubr.f32.mxu0 0.0
        %2202 = vmatmul.mubr.f32.gmra.mxu0 %v2042
        %v2203 = vpop.f32.mrf.mxu0
        %v2204 = vadd.f32 %v2034, %v2203
        %v2205 = vpop.f32.mrf.mxu0
        %v2206 = vadd.f32 %v2038, %v2205
        %2207 = vmatprep.mubr.f32.mxu0 0.0
        %2208 = vmatmul.mubr.f32.gmra.mxu0 %v2045
        %v2209 = vpop.f32.mrf.mxu0
        %v2210 = vadd.f32 %v2034, %v2209
        %v2211 = vpop.f32.mrf.mxu0
        %v2212 = vadd.f32 %v2038, %v2211
        %2213 = vmatprep.mubr.f32.mxu0 0.0
        %2214 = vmatmul.mubr.f32.gmra.mxu0 %v2048
        %v2215 = vpop.f32.mrf.mxu0
        %v2216 = vadd.f32 %v2034, %v2215
        %v2217 = vpop.f32.mrf.mxu0
        %v2218 = vadd.f32 %v2038, %v2217
        %2219 = vmatprep.mubr.f32.mxu0 0.0
        %2220 = vmatmul.mubr.f32.gmra.mxu0 %v2051
        %v2221 = vpop.f32.mrf.mxu0
        %v2222 = vadd.f32 %v2034, %v2221
        %v2223 = vpop.f32.mrf.mxu0
        %v2224 = vadd.f32 %v2038, %v2223
        %2225 = vmatprep.mubr.f32.mxu0 0.0
        %2226 = vmatmul.mubr.f32.gmra.mxu0 %v2054
        %v2227 = vpop.f32.mrf.mxu0
        %v2228 = vadd.f32 %v2034, %v2227
        %v2229 = vpop.f32.mrf.mxu0
        %v2230 = vadd.f32 %v2038, %v2229
        %2231 = vmatprep.mubr.f32.mxu0 0.0
        %2232 = vmatmul.mubr.f32.gmra.mxu0 %v2057
        %v2233 = vpop.f32.mrf.mxu0
        %v2234 = vadd.f32 %v2034, %v2233
        %v2235 = vpop.f32.mrf.mxu0
        %v2236 = vadd.f32 %v2038, %v2235
        %2237 = vmatprep.mubr.f32.mxu0 0.0
        %2238 = vmatmul.mubr.f32.gmra.mxu0 %v2060
        %v2239 = vpop.f32.mrf.mxu0
        %v2240 = vadd.f32 %v2034, %v2239
        %v2241 = vpop.f32.mrf.mxu0
        %v2242 = vadd.f32 %v2038, %v2241
        %2243 = vmatprep.mubr.f32.mxu0 0.0
        %2244 = vmatmul.mubr.f32.gmra.mxu0 %v2063
        %v2245 = vpop.f32.mrf.mxu0
        %v2246 = vadd.f32 %v2034, %v2245
        %v2247 = vpop.f32.mrf.mxu0
        %v2248 = vadd.f32 %v2038, %v2247
        %2249 = vmatprep.mubr.f32.mxu0 0.0
        %2250 = vmatmul.mubr.f32.gmra.mxu0 %v2066
        %v2251 = vpop.f32.mrf.mxu0
        %v2252 = vadd.f32 %v2034, %v2251
        %v2253 = vpop.f32.mrf.mxu0
        %v2254 = vadd.f32 %v2038, %v2253
        %2255 = vmatprep.mubr.f32.mxu0 0.0
        %2256 = vmatmul.mubr.f32.gmra.mxu0 %v2069
        %v2257 = vpop.f32.mrf.mxu0
        %v2258 = vadd.f32 %v2034, %v2257
        %v2259 = vpop.f32.mrf.mxu0
        %v2260 = vadd.f32 %v2038, %v2259
        %2261 = vmatprep.mubr.f32.mxu0 0.0
        %2262 = vmatmul.mubr.f32.gmra.mxu0 %v2072
        %v2263 = vpop.f32.mrf.mxu0
        %v2264 = vadd.f32 %v2034, %v2263
        %v2265 = vpop.f32.mrf.mxu0
        %v2266 = vadd.f32 %v2038, %v2265
        %2267 = vmatprep.mubr.f32.mxu0 0.0
        %2268 = vmatmul.mubr.f32.gmra.mxu0 %v2075
        %v2269 = vpop.f32.mrf.mxu0
        %v2270 = vadd.f32 %v2034, %v2269
        %v2271 = vpop.f32.mrf.mxu0
        %v2272 = vadd.f32 %v2038, %v2271
        %2273 = vmatprep.mubr.f32.mxu0 0.0
        %2274 = vmatmul.mubr.f32.gmra.mxu0 %v2078
        %v2275 = vpop.f32.mrf.mxu0
        %v2276 = vadd.f32 %v2034, %v2275
        %v2277 = vpop.f32.mrf.mxu0
        %v2278 = vadd.f32 %v2038, %v2277
        %2279 = vmatprep.mubr.f32.mxu0 0.0
        %2280 = vmatmul.mubr.f32.gmra.mxu0 %v2081
        %v2281 = vpop.f32.mrf.mxu0
        %v2282 = vadd.f32 %v2034, %v2281
        %v2283 = vpop.f32.mrf.mxu0
        %v2284 = vadd.f32 %v2038, %v2283
        %2285 = vmatprep.mubr.f32.mxu0 0.0
        %2286 = vmatmul.mubr.f32.gmra.mxu0 %v2084
        %v2287 = vpop.f32.mrf.mxu0
        %v2288 = vadd.f32 %v2034, %v2287
        %v2289 = vpop.f32.mrf.mxu0
        %v2290 = vadd.f32 %v2038, %v2289
        %2291 = vmatprep.mubr.f32.mxu0 0.0
        %2292 = vmatmul.mubr.f32.gmra.mxu0 %v2087
        %v2293 = vpop.f32.mrf.mxu0
        %v2294 = vadd.f32 %v2034, %v2293
        %v2295 = vpop.f32.mrf.mxu0
        %v2296 = vadd.f32 %v2038, %v2295
        %2297 = vmatprep.mubr.f32.mxu0 0.0
        %2298 = vmatmul.mubr.f32.gmra.mxu0 %v2090
        %v2299 = vpop.f32.mrf.mxu0
        %v2300 = vadd.f32 %v2034, %v2299
        %v2301 = vpop.f32.mrf.mxu0
        %v2302 = vadd.f32 %v2038, %v2301
        %2303 = vmatprep.mubr.f32.mxu0 0.0
        %2304 = vmatmul.mubr.f32.gmra.mxu0 %v2093
        %v2305 = vpop.f32.mrf.mxu0
        %v2306 = vadd.f32 %v2034, %v2305
        %v2307 = vpop.f32.mrf.mxu0
        %v2308 = vadd.f32 %v2038, %v2307
        %2309 = vmatprep.mubr.f32.mxu0 0.0
        %2310 = vmatmul.mubr.f32.gmra.mxu0 %v2096
        %v2311 = vpop.f32.mrf.mxu0
        %v2312 = vadd.f32 %v2034, %v2311
        %v2313 = vpop.f32.mrf.mxu0
        %v2314 = vadd.f32 %v2038, %v2313
        %2315 = vmatprep.mubr.f32.mxu0 0.0
        %2316 = vmatmul.mubr.f32.gmra.mxu0 %v2099
        %v2317 = vpop.f32.mrf.mxu0
        %v2318 = vadd.f32 %v2034, %v2317
        %v2319 = vpop.f32.mrf.mxu0
        %v2320 = vadd.f32 %v2038, %v2319
        %2321 = vmatprep.mubr.f32.mxu0 0.0
        %2322 = vmatmul.mubr.f32.gmra.mxu0 %v2102
        %v2323 = vpop.f32.mrf.mxu0
        %v2324 = vadd.f32 %v2034, %v2323
        %v2325 = vpop.f32.mrf.mxu0
        %v2326 = vadd.f32 %v2038, %v2325
        %2327 = vmatprep.mubr.f32.mxu0 0.0
        %2328 = vmatmul.mubr.f32.gmra.mxu0 %v2105
        %v2329 = vpop.f32.mrf.mxu0
        %v2330 = vadd.f32 %v2034, %v2329
        %v2331 = vpop.f32.mrf.mxu0
        %v2332 = vadd.f32 %v2038, %v2331
        %2333 = vmatprep.mubr.f32.mxu0 0.0
        %2334 = vmatmul.mubr.f32.gmra.mxu0 %v2108
        %v2335 = vpop.f32.mrf.mxu0
        %v2336 = vadd.f32 %v2034, %v2335
        %v2337 = vpop.f32.mrf.mxu0
        %v2338 = vadd.f32 %v2038, %v2337
        %2339 = vmatprep.mubr.f32.mxu0 0.0
        %2340 = vmatmul.mubr.f32.gmra.mxu0 %v2111
        %v2341 = vpop.f32.mrf.mxu0
        %v2342 = vadd.f32 %v2034, %v2341
        %v2343 = vpop.f32.mrf.mxu0
        %v2344 = vadd.f32 %v2038, %v2343
        %2345 = vmatprep.mubr.f32.mxu0 0.0
        %2346 = vmatmul.mubr.f32.gmra.mxu0 %v2114
        %v2347 = vpop.f32.mrf.mxu0
        %v2348 = vadd.f32 %v2034, %v2347
        %v2349 = vpop.f32.mrf.mxu0
        %v2350 = vadd.f32 %v2038, %v2349
        %2351 = vmatprep.mubr.f32.mxu0 0.0
        %2352 = vmatmul.mubr.f32.gmra.mxu0 %v2117
        %v2353 = vpop.f32.mrf.mxu0
        %v2354 = vadd.f32 %v2034, %v2353
        %v2355 = vpop.f32.mrf.mxu0
        %v2356 = vadd.f32 %v2038, %v2355
        %2357 = vmatprep.mubr.f32.mxu0 0.0
        %2358 = vmatmul.mubr.f32.gmra.mxu0 %v2120
        %v2359 = vpop.f32.mrf.mxu0
        %v2360 = vadd.f32 %v2034, %v2359
        %v2361 = vpop.f32.mrf.mxu0
        %v2362 = vadd.f32 %v2038, %v2361
        %2363 = vmatprep.mubr.f32.mxu0 0.0
        %2364 = vmatmul.mubr.f32.gmra.mxu0 %v2123
        %v2365 = vpop.f32.mrf.mxu0
        %v2366 = vadd.f32 %v2034, %v2365
        %v2367 = vpop.f32.mrf.mxu0
        %v2368 = vadd.f32 %v2038, %v2367
        %2369 = vmatprep.mubr.f32.mxu0 0.0
        %2370 = vmatmul.mubr.f32.gmra.mxu0 %v2126
        %v2371 = vpop.f32.mrf.mxu0
        %v2372 = vadd.f32 %v2034, %v2371
        %v2373 = vpop.f32.mrf.mxu0
        %v2374 = vadd.f32 %v2038, %v2373
        %2375 = vmatprep.mubr.f32.mxu0 0.0
        %2376 = vmatmul.mubr.f32.gmra.mxu0 %v2129
        %v2377 = vpop.f32.mrf.mxu0
        %v2378 = vadd.f32 %v2034, %v2377
        %v2379 = vpop.f32.mrf.mxu0
        %v2380 = vadd.f32 %v2038, %v2379
        %2381 = vmatprep.mubr.f32.mxu0 0.0
        %2382 = vmatmul.mubr.f32.gmra.mxu0 %v2132
        %v2383 = vpop.f32.mrf.mxu0
        %v2384 = vadd.f32 %v2034, %v2383
        %v2385 = vpop.f32.mrf.mxu0
        %v2386 = vadd.f32 %v2038, %v2385
        %2387 = vmatprep.mubr.f32.mxu0 0.0
        %2388 = vmatmul.mubr.f32.gmra.mxu0 %v2135
        %v2389 = vpop.f32.mrf.mxu0
        %v2390 = vadd.f32 %v2034, %v2389
        %v2391 = vpop.f32.mrf.mxu0
        %v2392 = vadd.f32 %v2038, %v2391
        %2393 = vdwg.mxu0
        %v2394 = vmax.f32 %v2204, 0.0
        %v2395 = vmax.f32 %v2206, 0.0
        %v2396 = vmax.f32 %v2210, 0.0
        %v2397 = vmax.f32 %v2212, 0.0
        %v2398 = vmax.f32 %v2216, 0.0
        %v2399 = vmax.f32 %v2218, 0.0
        %v2400 = vmax.f32 %v2222, 0.0
        %v2401 = vmax.f32 %v2224, 0.0
        %v2402 = vmax.f32 %v2228, 0.0
        %v2403 = vmax.f32 %v2230, 0.0
        %v2404 = vmax.f32 %v2234, 0.0
        %v2405 = vmax.f32 %v2236, 0.0
        %v2406 = vmax.f32 %v2240, 0.0
        %v2407 = vmax.f32 %v2242, 0.0
        %v2408 = vmax.f32 %v2246, 0.0
        %v2409 = vmax.f32 %v2248, 0.0
        %v2410 = vmax.f32 %v2252, 0.0
        %v2411 = vmax.f32 %v2254, 0.0
        %v2412 = vmax.f32 %v2258, 0.0
        %v2413 = vmax.f32 %v2260, 0.0
        %v2414 = vmax.f32 %v2264, 0.0
        %v2415 = vmax.f32 %v2266, 0.0
        %v2416 = vmax.f32 %v2270, 0.0
        %v2417 = vmax.f32 %v2272, 0.0
        %v2418 = vmax.f32 %v2276, 0.0
        %v2419 = vmax.f32 %v2278, 0.0
        %v2420 = vmax.f32 %v2282, 0.0
        %v2421 = vmax.f32 %v2284, 0.0
        %v2422 = vmax.f32 %v2288, 0.0
        %v2423 = vmax.f32 %v2290, 0.0
        %v2424 = vmax.f32 %v2294, 0.0
        %v2425 = vmax.f32 %v2296, 0.0
        %v2426 = vmax.f32 %v2300, 0.0
        %v2427 = vmax.f32 %v2302, 0.0
        %v2428 = vmax.f32 %v2306, 0.0
        %v2429 = vmax.f32 %v2308, 0.0
        %v2430 = vmax.f32 %v2312, 0.0
        %v2431 = vmax.f32 %v2314, 0.0
        %v2432 = vmax.f32 %v2318, 0.0
        %v2433 = vmax.f32 %v2320, 0.0
        %v2434 = vmax.f32 %v2324, 0.0
        %v2435 = vmax.f32 %v2326, 0.0
        %v2436 = vmax.f32 %v2330, 0.0
        %v2437 = vmax.f32 %v2332, 0.0
        %v2438 = vmax.f32 %v2336, 0.0
        %v2439 = vmax.f32 %v2338, 0.0
        %v2440 = vmax.f32 %v2342, 0.0
        %v2441 = vmax.f32 %v2344, 0.0
        %v2442 = vmax.f32 %v2348, 0.0
        %v2443 = vmax.f32 %v2350, 0.0
        %v2444 = vmax.f32 %v2354, 0.0
        %v2445 = vmax.f32 %v2356, 0.0
        %v2446 = vmax.f32 %v2360, 0.0
        %v2447 = vmax.f32 %v2362, 0.0
        %v2448 = vmax.f32 %v2366, 0.0
        %v2449 = vmax.f32 %v2368, 0.0
        %v2450 = vmax.f32 %v2372, 0.0
        %v2451 = vmax.f32 %v2374, 0.0
        %v2452 = vmax.f32 %v2378, 0.0
        %v2453 = vmax.f32 %v2380, 0.0
        %v2454 = vmax.f32 %v2384, 0.0
        %v2455 = vmax.f32 %v2386, 0.0
        %v2456 = vmax.f32 %v2390, 0.0
        %v2457 = vmax.f32 %v2392, 0.0
        %v2458 = vld [vmem:[#allocation5] sm:$0xff]
        %v2459 = vld [vmem:[#allocation5 + $0x8] sm:$0xff]
        %v2460 = vld [vmem:[#allocation5 + $0x10] sm:$0xff]
        %v2461 = vld [vmem:[#allocation5 + $0x18] sm:$0xff]
        %v2462 = vld [vmem:[#allocation5 + $0x20] sm:$0xff]
        %v2463 = vld [vmem:[#allocation5 + $0x28] sm:$0xff]
        %v2464 = vld [vmem:[#allocation5 + $0x30] sm:$0xff]
        %v2465 = vld [vmem:[#allocation5 + $0x38] sm:$0xff]
        %v2466 = vld [vmem:[#allocation5 + $0x40] sm:$0xff]
        %v2467 = vld [vmem:[#allocation5 + $0x48] sm:$0xff]
        %v2468 = vld [vmem:[#allocation5 + $0x50] sm:$0xff]
        %v2469 = vld [vmem:[#allocation5 + $0x58] sm:$0xff]
        %v2470 = vld [vmem:[#allocation5 + $0x60] sm:$0xff]
        %v2471 = vld [vmem:[#allocation5 + $0x68] sm:$0xff]
        %v2472 = vld [vmem:[#allocation5 + $0x70] sm:$0xff]
        %v2473 = vld [vmem:[#allocation5 + $0x78] sm:$0xff]
        %v2474 = vld [vmem:[#allocation5 + $0x80] sm:$0xff]
        %v2475 = vld [vmem:[#allocation5 + $0x88] sm:$0xff]
        %v2476 = vld [vmem:[#allocation5 + $0x90] sm:$0xff]
        %v2477 = vld [vmem:[#allocation5 + $0x98] sm:$0xff]
        %v2478 = vld [vmem:[#allocation5 + $0xa0] sm:$0xff]
        %v2479 = vld [vmem:[#allocation5 + $0xa8] sm:$0xff]
        %v2480 = vld [vmem:[#allocation5 + $0xb0] sm:$0xff]
        %v2481 = vld [vmem:[#allocation5 + $0xb8] sm:$0xff]
        %v2482 = vld [vmem:[#allocation5 + $0xc0] sm:$0xff]
        %v2483 = vld [vmem:[#allocation5 + $0xc8] sm:$0xff]
        %v2484 = vld [vmem:[#allocation5 + $0xd0] sm:$0xff]
        %v2485 = vld [vmem:[#allocation5 + $0xd8] sm:$0xff]
        %v2486 = vld [vmem:[#allocation5 + $0xe0] sm:$0xff]
        %v2487 = vld [vmem:[#allocation5 + $0xe8] sm:$0xff]
        %v2488 = vld [vmem:[#allocation5 + $0xf0] sm:$0xff]
        %v2489 = vld [vmem:[#allocation5 + $0xf8] sm:$0xff]
        %v2490 = vld [vmem:[#allocation5 + $0x100] sm:$0xff]
        %v2491 = vld [vmem:[#allocation5 + $0x108] sm:$0xff]
        %v2492 = vld [vmem:[#allocation5 + $0x110] sm:$0xff]
        %v2493 = vld [vmem:[#allocation5 + $0x118] sm:$0xff]
        %v2494 = vld [vmem:[#allocation5 + $0x120] sm:$0xff]
        %v2495 = vld [vmem:[#allocation5 + $0x128] sm:$0xff]
        %v2496 = vld [vmem:[#allocation5 + $0x130] sm:$0xff]
        %v2497 = vld [vmem:[#allocation5 + $0x138] sm:$0xff]
        %v2498 = vld [vmem:[%s12] sm:$0x3]
        %v2500 = vlaneseq
        %v2501 = vshrl.u32 %v2500, 7
        %v2502 = vsub.s32 0, %v2501
        %v2503 = vrot.slane %v2498, %v2502
        %v2504 = vlaneseq
        %v2505 = vshrl.u32 %v2504, 7
        %v2506 = vsub.s32 1, %v2505
        %v2507 = vrot.slane %v2498, %v2506
        %v2511 = vsel %vm1004, %v2395, 0
        %v2514 = vsel %vm1004, %v2397, 0
        %v2517 = vsel %vm1004, %v2399, 0
        %v2520 = vsel %vm1004, %v2401, 0
        %v2523 = vsel %vm1004, %v2403, 0
        %v2526 = vsel %vm1004, %v2405, 0
        %v2529 = vsel %vm1004, %v2407, 0
        %v2532 = vsel %vm1004, %v2409, 0
        %v2535 = vsel %vm1004, %v2411, 0
        %v2538 = vsel %vm1004, %v2413, 0
        %v2541 = vsel %vm1004, %v2415, 0
        %v2544 = vsel %vm1004, %v2417, 0
        %v2547 = vsel %vm1004, %v2419, 0
        %v2550 = vsel %vm1004, %v2421, 0
        %v2553 = vsel %vm1004, %v2423, 0
        %v2556 = vsel %vm1004, %v2425, 0
        %v2559 = vsel %vm1004, %v2427, 0
        %v2562 = vsel %vm1004, %v2429, 0
        %v2565 = vsel %vm1004, %v2431, 0
        %v2568 = vsel %vm1004, %v2433, 0
        %v2571 = vsel %vm1004, %v2435, 0
        %v2574 = vsel %vm1004, %v2437, 0
        %v2577 = vsel %vm1004, %v2439, 0
        %v2580 = vsel %vm1004, %v2441, 0
        %v2583 = vsel %vm1004, %v2443, 0
        %v2586 = vsel %vm1004, %v2445, 0
        %v2589 = vsel %vm1004, %v2447, 0
        %v2592 = vsel %vm1004, %v2449, 0
        %v2595 = vsel %vm1004, %v2451, 0
        %v2598 = vsel %vm1004, %v2453, 0
        %v2601 = vsel %vm1004, %v2455, 0
        %v2604 = vsel %vm1004, %v2457, 0
        %2606 = vmatprep.subr.mxu0 %v2489
        %2607 = vmatpush1.msra.mxu0 %v2488
        %2608 = vmatprep.subr.mxu0 %v2487
        %2609 = vmatpush1.msra.mxu0 %v2486
        %2610 = vmatprep.subr.mxu0 %v2485
        %2611 = vmatpush1.msra.mxu0 %v2484
        %2612 = vmatprep.subr.mxu0 %v2483
        %2613 = vmatpush1.msra.mxu0 %v2482
        %2614 = vmatprep.subr.mxu0 %v2481
        %2615 = vmatpush1.msra.mxu0 %v2480
        %2616 = vmatprep.subr.mxu0 %v2479
        %2617 = vmatpush1.msra.mxu0 %v2478
        %2618 = vmatprep.subr.mxu0 %v2477
        %2619 = vmatpush1.msra.mxu0 %v2476
        %2620 = vmatprep.subr.mxu0 %v2475
        %2621 = vmatpush1.msra.mxu0 %v2474
        %2622 = vmatprep.subr.mxu0 %v2473
        %2623 = vmatpush1.msra.mxu0 %v2472
        %2624 = vmatprep.subr.mxu0 %v2471
        %2625 = vmatpush1.msra.mxu0 %v2470
        %2626 = vmatprep.subr.mxu0 %v2469
        %2627 = vmatpush1.msra.mxu0 %v2468
        %2628 = vmatprep.subr.mxu0 %v2467
        %2629 = vmatpush1.msra.mxu0 %v2466
        %2630 = vmatprep.subr.mxu0 %v2465
        %2631 = vmatpush1.msra.mxu0 %v2464
        %2632 = vmatprep.subr.mxu0 %v2463
        %2633 = vmatpush1.msra.mxu0 %v2462
        %2634 = vmatprep.subr.mxu0 %v2461
        %2635 = vmatpush1.msra.mxu0 %v2460
        %2636 = vmatprep.subr.mxu0 %v2459
        %2637 = vmatpush1.msra.mxu0 %v2458
        %2638 = vmatprep.subr.mxu0 0.0
        %2639 = vmatpush2.msra.mxu0 0.0
        %2640 = vmatprep.subr.mxu0 0.0
        %2641 = vmatpush2.msra.mxu0 0.0
        %2642 = vmatprep.subr.mxu0 0.0
        %2643 = vmatpush2.msra.mxu0 0.0
        %2644 = vmatprep.subr.mxu0 0.0
        %2645 = vmatpush2.msra.mxu0 0.0
        %2646 = vmatprep.subr.mxu0 0.0
        %2647 = vmatpush2.msra.mxu0 0.0
        %2648 = vmatprep.subr.mxu0 0.0
        %2649 = vmatpush2.msra.mxu0 0.0
        %2650 = vmatprep.subr.mxu0 0.0
        %2651 = vmatpush2.msra.mxu0 0.0
        %2652 = vmatprep.subr.mxu0 0.0
        %2653 = vmatpush2.msra.mxu0 0.0
        %2654 = vmatprep.subr.mxu0 0.0
        %2655 = vmatpush2.msra.mxu0 0.0
        %2656 = vmatprep.subr.mxu0 0.0
        %2657 = vmatpush2.msra.mxu0 0.0
        %2658 = vmatprep.subr.mxu0 0.0
        %2659 = vmatpush2.msra.mxu0 0.0
        %2660 = vmatprep.subr.mxu0 0.0
        %2661 = vmatpush2.msra.mxu0 0.0
        %2662 = vmatprep.subr.mxu0 %v2497
        %2663 = vmatpush2.msra.mxu0 %v2496
        %2664 = vmatprep.subr.mxu0 %v2495
        %2665 = vmatpush2.msra.mxu0 %v2494
        %2666 = vmatprep.subr.mxu0 %v2493
        %2667 = vmatpush2.msra.mxu0 %v2492
        %2668 = vmatprep.subr.mxu0 %v2491
        %2669 = vmatpush2.msra.mxu0 %v2490
        %2670 = vmatprep.mubr.f32.mxu0 %v2511
        %2671 = vmatmul.mubr.f32.gmra.mxu0 %v2394
        %v2672 = vpop.f32.mrf.mxu0
        %v2673 = vadd.f32 %v2503, %v2672
        %v2674 = vpop.f32.mrf.mxu0
        %v2675 = vadd.f32 %v2507, %v2674
        %2676 = vmatprep.mubr.f32.mxu0 %v2514
        %2677 = vmatmul.mubr.f32.gmra.mxu0 %v2396
        %v2678 = vpop.f32.mrf.mxu0
        %v2679 = vadd.f32 %v2503, %v2678
        %v2680 = vpop.f32.mrf.mxu0
        %v2681 = vadd.f32 %v2507, %v2680
        %2682 = vmatprep.mubr.f32.mxu0 %v2517
        %2683 = vmatmul.mubr.f32.gmra.mxu0 %v2398
        %v2684 = vpop.f32.mrf.mxu0
        %v2685 = vadd.f32 %v2503, %v2684
        %v2686 = vpop.f32.mrf.mxu0
        %v2687 = vadd.f32 %v2507, %v2686
        %2688 = vmatprep.mubr.f32.mxu0 %v2520
        %2689 = vmatmul.mubr.f32.gmra.mxu0 %v2400
        %v2690 = vpop.f32.mrf.mxu0
        %v2691 = vadd.f32 %v2503, %v2690
        %v2692 = vpop.f32.mrf.mxu0
        %v2693 = vadd.f32 %v2507, %v2692
        %2694 = vmatprep.mubr.f32.mxu0 %v2523
        %2695 = vmatmul.mubr.f32.gmra.mxu0 %v2402
        %v2696 = vpop.f32.mrf.mxu0
        %v2697 = vadd.f32 %v2503, %v2696
        %v2698 = vpop.f32.mrf.mxu0
        %v2699 = vadd.f32 %v2507, %v2698
        %2700 = vmatprep.mubr.f32.mxu0 %v2526
        %2701 = vmatmul.mubr.f32.gmra.mxu0 %v2404
        %v2702 = vpop.f32.mrf.mxu0
        %v2703 = vadd.f32 %v2503, %v2702
        %v2704 = vpop.f32.mrf.mxu0
        %v2705 = vadd.f32 %v2507, %v2704
        %2706 = vmatprep.mubr.f32.mxu0 %v2529
        %2707 = vmatmul.mubr.f32.gmra.mxu0 %v2406
        %v2708 = vpop.f32.mrf.mxu0
        %v2709 = vadd.f32 %v2503, %v2708
        %v2710 = vpop.f32.mrf.mxu0
        %v2711 = vadd.f32 %v2507, %v2710
        %2712 = vmatprep.mubr.f32.mxu0 %v2532
        %2713 = vmatmul.mubr.f32.gmra.mxu0 %v2408
        %v2714 = vpop.f32.mrf.mxu0
        %v2715 = vadd.f32 %v2503, %v2714
        %v2716 = vpop.f32.mrf.mxu0
        %v2717 = vadd.f32 %v2507, %v2716
        %2718 = vmatprep.mubr.f32.mxu0 %v2535
        %2719 = vmatmul.mubr.f32.gmra.mxu0 %v2410
        %v2720 = vpop.f32.mrf.mxu0
        %v2721 = vadd.f32 %v2503, %v2720
        %v2722 = vpop.f32.mrf.mxu0
        %v2723 = vadd.f32 %v2507, %v2722
        %2724 = vmatprep.mubr.f32.mxu0 %v2538
        %2725 = vmatmul.mubr.f32.gmra.mxu0 %v2412
        %v2726 = vpop.f32.mrf.mxu0
        %v2727 = vadd.f32 %v2503, %v2726
        %v2728 = vpop.f32.mrf.mxu0
        %v2729 = vadd.f32 %v2507, %v2728
        %2730 = vmatprep.mubr.f32.mxu0 %v2541
        %2731 = vmatmul.mubr.f32.gmra.mxu0 %v2414
        %v2732 = vpop.f32.mrf.mxu0
        %v2733 = vadd.f32 %v2503, %v2732
        %v2734 = vpop.f32.mrf.mxu0
        %v2735 = vadd.f32 %v2507, %v2734
        %2736 = vmatprep.mubr.f32.mxu0 %v2544
        %2737 = vmatmul.mubr.f32.gmra.mxu0 %v2416
        %v2738 = vpop.f32.mrf.mxu0
        %v2739 = vadd.f32 %v2503, %v2738
        %v2740 = vpop.f32.mrf.mxu0
        %v2741 = vadd.f32 %v2507, %v2740
        %2742 = vmatprep.mubr.f32.mxu0 %v2547
        %2743 = vmatmul.mubr.f32.gmra.mxu0 %v2418
        %v2744 = vpop.f32.mrf.mxu0
        %v2745 = vadd.f32 %v2503, %v2744
        %v2746 = vpop.f32.mrf.mxu0
        %v2747 = vadd.f32 %v2507, %v2746
        %2748 = vmatprep.mubr.f32.mxu0 %v2550
        %2749 = vmatmul.mubr.f32.gmra.mxu0 %v2420
        %v2750 = vpop.f32.mrf.mxu0
        %v2751 = vadd.f32 %v2503, %v2750
        %v2752 = vpop.f32.mrf.mxu0
        %v2753 = vadd.f32 %v2507, %v2752
        %2754 = vmatprep.mubr.f32.mxu0 %v2553
        %2755 = vmatmul.mubr.f32.gmra.mxu0 %v2422
        %v2756 = vpop.f32.mrf.mxu0
        %v2757 = vadd.f32 %v2503, %v2756
        %v2758 = vpop.f32.mrf.mxu0
        %v2759 = vadd.f32 %v2507, %v2758
        %2760 = vmatprep.mubr.f32.mxu0 %v2556
        %2761 = vmatmul.mubr.f32.gmra.mxu0 %v2424
        %v2762 = vpop.f32.mrf.mxu0
        %v2763 = vadd.f32 %v2503, %v2762
        %v2764 = vpop.f32.mrf.mxu0
        %v2765 = vadd.f32 %v2507, %v2764
        %2766 = vmatprep.mubr.f32.mxu0 %v2559
        %2767 = vmatmul.mubr.f32.gmra.mxu0 %v2426
        %v2768 = vpop.f32.mrf.mxu0
        %v2769 = vadd.f32 %v2503, %v2768
        %v2770 = vpop.f32.mrf.mxu0
        %v2771 = vadd.f32 %v2507, %v2770
        %2772 = vmatprep.mubr.f32.mxu0 %v2562
        %2773 = vmatmul.mubr.f32.gmra.mxu0 %v2428
        %v2774 = vpop.f32.mrf.mxu0
        %v2775 = vadd.f32 %v2503, %v2774
        %v2776 = vpop.f32.mrf.mxu0
        %v2777 = vadd.f32 %v2507, %v2776
        %2778 = vmatprep.mubr.f32.mxu0 %v2565
        %2779 = vmatmul.mubr.f32.gmra.mxu0 %v2430
        %v2780 = vpop.f32.mrf.mxu0
        %v2781 = vadd.f32 %v2503, %v2780
        %v2782 = vpop.f32.mrf.mxu0
        %v2783 = vadd.f32 %v2507, %v2782
        %2784 = vmatprep.mubr.f32.mxu0 %v2568
        %2785 = vmatmul.mubr.f32.gmra.mxu0 %v2432
        %v2786 = vpop.f32.mrf.mxu0
        %v2787 = vadd.f32 %v2503, %v2786
        %v2788 = vpop.f32.mrf.mxu0
        %v2789 = vadd.f32 %v2507, %v2788
        %2790 = vmatprep.mubr.f32.mxu0 %v2571
        %2791 = vmatmul.mubr.f32.gmra.mxu0 %v2434
        %v2792 = vpop.f32.mrf.mxu0
        %v2793 = vadd.f32 %v2503, %v2792
        %v2794 = vpop.f32.mrf.mxu0
        %v2795 = vadd.f32 %v2507, %v2794
        %2796 = vmatprep.mubr.f32.mxu0 %v2574
        %2797 = vmatmul.mubr.f32.gmra.mxu0 %v2436
        %v2798 = vpop.f32.mrf.mxu0
        %v2799 = vadd.f32 %v2503, %v2798
        %v2800 = vpop.f32.mrf.mxu0
        %v2801 = vadd.f32 %v2507, %v2800
        %2802 = vmatprep.mubr.f32.mxu0 %v2577
        %2803 = vmatmul.mubr.f32.gmra.mxu0 %v2438
        %v2804 = vpop.f32.mrf.mxu0
        %v2805 = vadd.f32 %v2503, %v2804
        %v2806 = vpop.f32.mrf.mxu0
        %v2807 = vadd.f32 %v2507, %v2806
        %2808 = vmatprep.mubr.f32.mxu0 %v2580
        %2809 = vmatmul.mubr.f32.gmra.mxu0 %v2440
        %v2810 = vpop.f32.mrf.mxu0
        %v2811 = vadd.f32 %v2503, %v2810
        %v2812 = vpop.f32.mrf.mxu0
        %v2813 = vadd.f32 %v2507, %v2812
        %2814 = vmatprep.mubr.f32.mxu0 %v2583
        %2815 = vmatmul.mubr.f32.gmra.mxu0 %v2442
        %v2816 = vpop.f32.mrf.mxu0
        %v2817 = vadd.f32 %v2503, %v2816
        %v2818 = vpop.f32.mrf.mxu0
        %v2819 = vadd.f32 %v2507, %v2818
        %2820 = vmatprep.mubr.f32.mxu0 %v2586
        %2821 = vmatmul.mubr.f32.gmra.mxu0 %v2444
        %v2822 = vpop.f32.mrf.mxu0
        %v2823 = vadd.f32 %v2503, %v2822
        %v2824 = vpop.f32.mrf.mxu0
        %v2825 = vadd.f32 %v2507, %v2824
        %2826 = vmatprep.mubr.f32.mxu0 %v2589
        %2827 = vmatmul.mubr.f32.gmra.mxu0 %v2446
        %v2828 = vpop.f32.mrf.mxu0
        %v2829 = vadd.f32 %v2503, %v2828
        %v2830 = vpop.f32.mrf.mxu0
        %v2831 = vadd.f32 %v2507, %v2830
        %2832 = vmatprep.mubr.f32.mxu0 %v2592
        %2833 = vmatmul.mubr.f32.gmra.mxu0 %v2448
        %v2834 = vpop.f32.mrf.mxu0
        %v2835 = vadd.f32 %v2503, %v2834
        %v2836 = vpop.f32.mrf.mxu0
        %v2837 = vadd.f32 %v2507, %v2836
        %2838 = vmatprep.mubr.f32.mxu0 %v2595
        %2839 = vmatmul.mubr.f32.gmra.mxu0 %v2450
        %v2840 = vpop.f32.mrf.mxu0
        %v2841 = vadd.f32 %v2503, %v2840
        %v2842 = vpop.f32.mrf.mxu0
        %v2843 = vadd.f32 %v2507, %v2842
        %2844 = vmatprep.mubr.f32.mxu0 %v2598
        %2845 = vmatmul.mubr.f32.gmra.mxu0 %v2452
        %v2846 = vpop.f32.mrf.mxu0
        %v2847 = vadd.f32 %v2503, %v2846
        %v2848 = vpop.f32.mrf.mxu0
        %v2849 = vadd.f32 %v2507, %v2848
        %2850 = vmatprep.mubr.f32.mxu0 %v2601
        %2851 = vmatmul.mubr.f32.gmra.mxu0 %v2454
        %v2852 = vpop.f32.mrf.mxu0
        %v2853 = vadd.f32 %v2503, %v2852
        %v2854 = vpop.f32.mrf.mxu0
        %v2855 = vadd.f32 %v2507, %v2854
        %2856 = vmatprep.mubr.f32.mxu0 %v2604
        %2857 = vmatmul.mubr.f32.gmra.mxu0 %v2456
        %v2858 = vpop.f32.mrf.mxu0
        %v2859 = vadd.f32 %v2503, %v2858
        %v2860 = vpop.f32.mrf.mxu0
        %v2861 = vadd.f32 %v2507, %v2860
        %2862 = vdwg.mxu0
        %2863 = vst [vmem:[%s494] sm:$0xff] %v2673
        %2864 = vst [vmem:[%s494 + $0x8] sm:$0xff] %v2675
        %2865 = vst [vmem:[%s494 + $0x10] sm:$0xff] %v2679
        %2866 = vst [vmem:[%s494 + $0x18] sm:$0xff] %v2681
        %2867 = vst [vmem:[%s494 + $0x20] sm:$0xff] %v2685
        %2868 = vst [vmem:[%s494 + $0x28] sm:$0xff] %v2687
        %2869 = vst [vmem:[%s494 + $0x30] sm:$0xff] %v2691
        %2870 = vst [vmem:[%s494 + $0x38] sm:$0xff] %v2693
        %2871 = vst [vmem:[%s494 + $0x40] sm:$0xff] %v2697
        %2872 = vst [vmem:[%s494 + $0x48] sm:$0xff] %v2699
        %2873 = vst [vmem:[%s494 + $0x50] sm:$0xff] %v2703
        %2874 = vst [vmem:[%s494 + $0x58] sm:$0xff] %v2705
        %2875 = vst [vmem:[%s494 + $0x60] sm:$0xff] %v2709
        %2876 = vst [vmem:[%s494 + $0x68] sm:$0xff] %v2711
        %2877 = vst [vmem:[%s494 + $0x70] sm:$0xff] %v2715
        %2878 = vst [vmem:[%s494 + $0x78] sm:$0xff] %v2717
        %2879 = vst [vmem:[%s494 + $0x80] sm:$0xff] %v2721
        %2880 = vst [vmem:[%s494 + $0x88] sm:$0xff] %v2723
        %2881 = vst [vmem:[%s494 + $0x90] sm:$0xff] %v2727
        %2882 = vst [vmem:[%s494 + $0x98] sm:$0xff] %v2729
        %2883 = vst [vmem:[%s494 + $0xa0] sm:$0xff] %v2733
        %2884 = vst [vmem:[%s494 + $0xa8] sm:$0xff] %v2735
        %2885 = vst [vmem:[%s494 + $0xb0] sm:$0xff] %v2739
        %2886 = vst [vmem:[%s494 + $0xb8] sm:$0xff] %v2741
        %2887 = vst [vmem:[%s494 + $0xc0] sm:$0xff] %v2745
        %2888 = vst [vmem:[%s494 + $0xc8] sm:$0xff] %v2747
        %2889 = vst [vmem:[%s494 + $0xd0] sm:$0xff] %v2751
        %2890 = vst [vmem:[%s494 + $0xd8] sm:$0xff] %v2753
        %2891 = vst [vmem:[%s494 + $0xe0] sm:$0xff] %v2757
        %2892 = vst [vmem:[%s494 + $0xe8] sm:$0xff] %v2759
        %2893 = vst [vmem:[%s494 + $0xf0] sm:$0xff] %v2763
        %2894 = vst [vmem:[%s494 + $0xf8] sm:$0xff] %v2765
        %2895 = vst [vmem:[%s494 + $0x100] sm:$0xff] %v2769
        %2896 = vst [vmem:[%s494 + $0x108] sm:$0xff] %v2771
        %2897 = vst [vmem:[%s494 + $0x110] sm:$0xff] %v2775
        %2898 = vst [vmem:[%s494 + $0x118] sm:$0xff] %v2777
        %2899 = vst [vmem:[%s494 + $0x120] sm:$0xff] %v2781
        %2900 = vst [vmem:[%s494 + $0x128] sm:$0xff] %v2783
        %2901 = vst [vmem:[%s494 + $0x130] sm:$0xff] %v2787
        %2902 = vst [vmem:[%s494 + $0x138] sm:$0xff] %v2789
        %2903 = vst [vmem:[%s494 + $0x140] sm:$0xff] %v2793
        %2904 = vst [vmem:[%s494 + $0x148] sm:$0xff] %v2795
        %2905 = vst [vmem:[%s494 + $0x150] sm:$0xff] %v2799
        %2906 = vst [vmem:[%s494 + $0x158] sm:$0xff] %v2801
        %2907 = vst [vmem:[%s494 + $0x160] sm:$0xff] %v2805
        %2908 = vst [vmem:[%s494 + $0x168] sm:$0xff] %v2807
        %2909 = vst [vmem:[%s494 + $0x170] sm:$0xff] %v2811
        %2910 = vst [vmem:[%s494 + $0x178] sm:$0xff] %v2813
        %2911 = vst [vmem:[%s494 + $0x180] sm:$0xff] %v2817
        %2912 = vst [vmem:[%s494 + $0x188] sm:$0xff] %v2819
        %2913 = vst [vmem:[%s494 + $0x190] sm:$0xff] %v2823
        %2914 = vst [vmem:[%s494 + $0x198] sm:$0xff] %v2825
        %2915 = vst [vmem:[%s494 + $0x1a0] sm:$0xff] %v2829
        %2916 = vst [vmem:[%s494 + $0x1a8] sm:$0xff] %v2831
        %2917 = vst [vmem:[%s494 + $0x1b0] sm:$0xff] %v2835
        %2918 = vst [vmem:[%s494 + $0x1b8] sm:$0xff] %v2837
        %2919 = vst [vmem:[%s494 + $0x1c0] sm:$0xff] %v2841
        %2920 = vst [vmem:[%s494 + $0x1c8] sm:$0xff] %v2843
        %2921 = vst [vmem:[%s494 + $0x1d0] sm:$0xff] %v2847
        %2922 = vst [vmem:[%s494 + $0x1d8] sm:$0xff] %v2849
        %2923 = vst [vmem:[%s494 + $0x1e0] sm:$0xff] %v2853
        %2924 = vst [vmem:[%s494 + $0x1e8] sm:$0xff] %v2855
        %2925 = vst [vmem:[%s494 + $0x1f0] sm:$0xff] %v2859
        %2926 = vst [vmem:[%s494 + $0x1f8] sm:$0xff] %v2861
        %s2927 = sand.u32 %s317, 1
        %s2928 = scalar_lea.sflag [#allocation4], %s2927
        %s2929 = sand.u32 %s317, 1
        %s2930 = smul.addr %s2929, 512
        %s2931 = scalar_lea.vmem [#allocation7], %s2930
        %s2932 = smul.u32 32, %s31
        %p2933 = scmp.lt.s32.totalorder %s2932, 63
        %s2934 = scalar_select %p2933, %s2932, 63
        %s2935 = smul.addr %s2934, 8
        %s2936 = scalar_lea.vmem %s14, %s2935
        // Predicated region
        $region81: #{mlp_autoencoder.1} parent=71 // pred_check
          %p2937 = pneg %p327
        $region82: #{mlp_autoencoder.1} parent=71 // pred_check_branch
          %2939 = sbr.rel (%p2937) target = $region84
        $region83: #{mlp_autoencoder.1} parent=71 // pred_region
          %s2940 = smul.u32 32, %s31
          %s2942 = ssub.s32 8192, 8192
          %2943 = vsyncadd %s2928, %s2942
          %s2944 = smul.addr %s2940, 2
          %s2945 = smul.addr %s2944, 128
          %s2946 = scalar_lea.hbm %s13, %s2945
          %s2947 = sshll.u32 %s2931, 4
          %s2948 = int_to_ptr.vmem [resolvable:$true] %s2947
          %2953 = dma.vmem_to_hbm [thread:$0]  %s2948, 8192, %s2946, %s2928, 256, 256, 16
        $region84: #{mlp_autoencoder.1} parent=71 // pred_fallthru
          _
        // Predicated region
        $region85: #{mlp_autoencoder.1} parent=71 // pred_check
          %p2954 = pneg %p353
        $region86: #{mlp_autoencoder.1} parent=71 // pred_check_branch
          %2956 = sbr.rel (%p2954) target = $region88
        $region87: #{mlp_autoencoder.1} parent=71 // pred_region
          %s2957 = smul.u32 32, %s31
        $region88: #{mlp_autoencoder.1} parent=71 // pred_fallthru
          _
      $region72: #{mlp_autoencoder.1} parent=5 // pred_fallthru
        _
      %p2958 = scmp.le.s32.totalorder 2, %s26
      // Predicated region
      $region89: #{mlp_autoencoder.1} parent=5 // pred_check
        %p2959 = pneg %p2958
      $region90: #{mlp_autoencoder.1} parent=5 // pred_check_branch
        %2961 = sbr.rel (%p2959) target = $region92
      $region91: #{mlp_autoencoder.1} parent=5 // pred_region
        %s2962 = ssub.s32 %s26, 2
        // Predicated region
        $region93: #{mlp_autoencoder.1} parent=91 // pred_check
          %p2963 = pneg %p333
        $region94: #{mlp_autoencoder.1} parent=91 // pred_check_branch
          %2965 = sbr.rel (%p2963) target = $region96
        $region95: #{mlp_autoencoder.1} parent=91 // pred_region
          %s2966 = sand.u32 %s318, 1
          %s2967 = scalar_lea.sflag [#allocation4], %s2966
          %s2968 = sand.u32 %s318, 1
          %s2969 = smul.addr %s2968, 512
          %s2970 = scalar_lea.vmem [#allocation7], %s2969
          %2971 = dma.done %s2967, 8192
        $region96: #{mlp_autoencoder.1} parent=91 // pred_fallthru
          _
        // Predicated region
        $region97: #{mlp_autoencoder.1} parent=91 // pred_check
          %p2972 = pneg %p359
        $region98: #{mlp_autoencoder.1} parent=91 // pred_check_branch
          %2974 = sbr.rel (%p2972) target = $region100
        $region99: #{mlp_autoencoder.1} parent=91 // pred_region
          %s2975 = smul.u32 32, %s32
          %p2976 = scmp.lt.s32.totalorder %s2975, 63
          %s2977 = scalar_select %p2976, %s2975, 63
          %s2978 = smul.addr %s2977, 8
          %s2979 = scalar_lea.vmem %s14, %s2978
        $region100: #{mlp_autoencoder.1} parent=91 // pred_fallthru
          _
      $region92: #{mlp_autoencoder.1} parent=5 // pred_fallthru
        _
    $region6: #{mlp_autoencoder.1} parent=1 // loop_footer
      %s30 = sadd.s32 1, %s26
    $region7: #{mlp_autoencoder.1} parent=1 // loop_footer_branch
      %25 = sbr.rel target = $region3
    $region8: #{mlp_autoencoder.1} parent=1 // loop_exit
      _
    %2980 = vsyncpa [#allocation3], 1
    %s2981 = scalar_lea.sflag [#allocation3], 1
    %2982 = vsyncpa %s2981, 1
    %2983 = vsyncpa [#allocation6], 1
    %2984 = vsyncpa [#allocation4], 1
    %s2985 = scalar_lea.sflag [#allocation4], 1
    %2986 = vsyncpa %s2985, 1

</llo_original>
